<compile_context>
chip_gen: v6e
topology: v6e:2x2x1
jax: 0.10.0
libtpu: 0.0.40
codegen_flags: <defaults>
</compile_context>

<pallas_src>
import functools

import jax
import jax.numpy as jnp
from jax import lax
from jax.experimental import pallas as pl
from jax.experimental.pallas import tpu as pltpu


def _round_up(x, m):
    return ((x + m - 1) // m) * m


def _lstm_kernel(gx_ref, whh_ref,              # inputs
                 out_ref, hn_ref, cn_ref,      # outputs
                 h_sc, c_sc,                   # scratch (carried state)
                 *, hp, tb, seq_len):
    """One grid step processes `tb` timesteps of the recurrence.

    gx_ref : (tb, Bp, 4*Hp) f32   precomputed x@W_ih^T + bias, per-gate padded
    whh_ref: (Hp, 4*Hp)     bf16  recurrent weights (per-gate padded)
    out_ref: (tb, Bp, Hp)   f32
    hn/cn  : (Bp, Hp)       f32   written only on the last grid step
    """
    s = pl.program_id(0)

    @pl.when(s == 0)
    def _():
        h_sc[...] = jnp.zeros_like(h_sc)
        c_sc[...] = jnp.zeros_like(c_sc)

    w_hh = whh_ref[...]                       # resident weight, load once

    def step(t, carry):
        h_prev = h_sc[...]                    # (Bp, Hp) f32
        c_prev = c_sc[...]

        # gates: (Bp, 4*Hp), PyTorch gate order [i, f, g, o]; bf16 MXU inputs,
        # f32 accumulation; bias already folded into gx.
        gates = gx_ref[t] + jnp.dot(
            h_prev.astype(jnp.bfloat16), w_hh,
            preferred_element_type=jnp.float32)

        i_g = jax.nn.sigmoid(gates[:, 0 * hp:1 * hp])
        f_g = jax.nn.sigmoid(gates[:, 1 * hp:2 * hp])
        g_g = jnp.tanh(gates[:, 2 * hp:3 * hp])
        o_g = jax.nn.sigmoid(gates[:, 3 * hp:4 * hp])

        c_new = f_g * c_prev + i_g * g_g
        h_new = o_g * jnp.tanh(c_new)

        # Guard padded tail timesteps so the carried state (and thus h_n/c_n)
        # is not corrupted. Padded output rows are discarded by the wrapper.
        valid = (s * tb + t) < seq_len
        h_sc[...] = jnp.where(valid, h_new, h_prev)
        c_sc[...] = jnp.where(valid, c_new, c_prev)

        out_ref[t] = h_new                    # lane-dense (Hp >= 128) store
        return carry

    lax.fori_loop(0, tb, step, 0, unroll=True)

    @pl.when(s == pl.num_programs(0) - 1)
    def _():
        hn_ref[...] = h_sc[...]
        cn_ref[...] = c_sc[...]


def lstm_pallas(gates_x_tbg, w_hh_t, *, time_block=16):
    """Run the LSTM recurrence.

    gates_x_tbg: (T, B, 4H) f32 -- x @ W_ih^T + (b_ih + b_hh), time-major.
    w_hh_t     : (H, 4H)        -- recurrent weights (transposed), any float.
    Returns (output (T, B, H) f32, h_n (B, H) f32, c_n (B, H) f32).
    """
    T, B, four_h = gates_x_tbg.shape
    H = four_h // 4

    Hp = _round_up(H, 128)                    # lane-aligned gate width
    Bp = _round_up(B, 8)                      # sublane-aligned batch
    TB = min(time_block, T)                   # timesteps per grid step
    Tp = _round_up(T, TB)

    # per-gate lane padding + batch/time padding of the precomputed gates
    g = gates_x_tbg.reshape(T, B, 4, H)
    g = jnp.pad(g, ((0, Tp - T), (0, Bp - B), (0, 0), (0, Hp - H)))
    g = g.reshape(Tp, Bp, 4 * Hp)

    # per-gate padded recurrent weights, bf16 for the MXU
    w = w_hh_t.astype(jnp.bfloat16).reshape(H, 4, H)
    w = jnp.pad(w, ((0, Hp - H), (0, 0), (0, Hp - H)))
    w = w.reshape(Hp, 4 * Hp)

    kernel = functools.partial(_lstm_kernel, hp=Hp, tb=TB, seq_len=T)

    out_p, hn_p, cn_p = pl.pallas_call(
        kernel,
        out_shape=(
            jax.ShapeDtypeStruct((Tp, Bp, Hp), jnp.float32),
            jax.ShapeDtypeStruct((Bp, Hp), jnp.float32),
            jax.ShapeDtypeStruct((Bp, Hp), jnp.float32),
        ),
        grid=(Tp // TB,),
        in_specs=[
            pl.BlockSpec((TB, Bp, 4 * Hp), lambda s: (s, 0, 0)),   # gates_x
            pl.BlockSpec((Hp, 4 * Hp), lambda s: (0, 0)),           # W_hh^T
        ],
        out_specs=[
            pl.BlockSpec((TB, Bp, Hp), lambda s: (s, 0, 0)),        # output
            pl.BlockSpec((Bp, Hp), lambda s: (0, 0)),               # h_n
            pl.BlockSpec((Bp, Hp), lambda s: (0, 0)),               # c_n
        ],
        scratch_shapes=[
            pltpu.VMEM((Bp, Hp), jnp.float32),                      # h carry
            pltpu.VMEM((Bp, Hp), jnp.float32),                      # c carry
        ],
        compiler_params=pltpu.CompilerParams(
            dimension_semantics=("arbitrary",)),                    # recurrence
    )(g, w)

    return out_p[:T, :B, :H], hn_p[:B, :H], cn_p[:B, :H]


class EncoderRNNPallas:
    def __init__(self, input_size, hidden_size, dropout_p=0.1, key=None):
        self.hidden_size = hidden_size
        self.dropout_p = dropout_p
        if key is None:
            key = jax.random.PRNGKey(0)
        k_emb, k_wih, k_whh, k_bih, k_bhh = jax.random.split(key, 5)
        H = hidden_size
        bound = 1.0 / (H ** 0.5)
        # nn.Embedding default init: N(0, 1)
        self.embedding = jax.random.normal(k_emb, (input_size, H), jnp.float32)
        # nn.LSTM default init: U(-1/sqrt(H), 1/sqrt(H)); PyTorch stores (4H, H)
        w_ih = jax.random.uniform(k_wih, (4 * H, H), jnp.float32, -bound, bound)
        w_hh = jax.random.uniform(k_whh, (4 * H, H), jnp.float32, -bound, bound)
        b_ih = jax.random.uniform(k_bih, (4 * H,), jnp.float32, -bound, bound)
        b_hh = jax.random.uniform(k_bhh, (4 * H,), jnp.float32, -bound, bound)
        self.w_ih_t = jnp.transpose(w_ih)                 # (H, 4H) f32
        self.w_hh_t = jnp.transpose(w_hh)                 # (H, 4H) f32
        self.bias = b_ih + b_hh                           # (4H,)

    def __call__(self, input_ids):
        # input_ids: (B, T) int32
        embedded = jnp.take(self.embedding, input_ids, axis=0)   # (B, T, H)
        # dropout: identity (eval mode)
        # Hoisted input projection + fused bias: one big parallel matmul.
        gates_x = jnp.einsum(
            "bth,hg->btg", embedded, self.w_ih_t,
            precision=lax.Precision.HIGHEST) + self.bias          # (B, T, 4H)
        gates_x_tbg = jnp.transpose(gates_x, (1, 0, 2))           # (T, B, 4H)
        out_tbh, h_n, c_n = lstm_pallas(gates_x_tbg, self.w_hh_t)
        output = jnp.transpose(out_tbh, (1, 0, 2))                # (B, T, H)
        hidden = (h_n[None, :, :], c_n[None, :, :])               # (1, B, H)
        return output, hidden


def _lstm_reference(gates_x_tbg, w_hh_t):
    """Pure-JAX reference mirroring the kernel math (bf16 MXU inputs, f32
    accumulation, f32 elementwise/carry)."""
    T, B, G = gates_x_tbg.shape
    H = G // 4
    w_bf16 = w_hh_t.astype(jnp.bfloat16)

    def step(carry, gx):
        h, c = carry
        gates = gx + jnp.dot(h.astype(jnp.bfloat16), w_bf16,
                             preferred_element_type=jnp.float32)
        i = jax.nn.sigmoid(gates[:, 0 * H:1 * H])
        f = jax.nn.sigmoid(gates[:, 1 * H:2 * H])
        g = jnp.tanh(gates[:, 2 * H:3 * H])
        o = jax.nn.sigmoid(gates[:, 3 * H:4 * H])
        c = f * c + i * g
        h = o * jnp.tanh(c)
        return (h, c), h

    init = (jnp.zeros((B, H), jnp.float32), jnp.zeros((B, H), jnp.float32))
    (h_n, c_n), outs = lax.scan(step, init, gates_x_tbg)
    return outs, h_n, c_n


if __name__ == "__main__":
    vocab_size = 16
    hidden_size = 32
    batch = 2
    seq = 8

    key = jax.random.PRNGKey(0)
    k_model, k_ids = jax.random.split(key)

    model = EncoderRNNPallas(vocab_size, hidden_size, dropout_p=0.1, key=k_model)
    input_ids = jax.random.randint(k_ids, (batch, seq), 0, vocab_size,
                                   dtype=jnp.int32)

    output, (h_n, c_n) = model(input_ids)
    output = jax.block_until_ready(output)
    h_n = jax.block_until_ready(h_n)
    c_n = jax.block_until_ready(c_n)

    assert output.shape == (batch, seq, hidden_size)
    assert h_n.shape == (1, batch, hidden_size)
    assert c_n.shape == (1, batch, hidden_size)

    # cross-check against a pure-JAX reference using the same hoisted gates
    emb = jnp.take(model.embedding, input_ids, axis=0)
    gates_x = jnp.einsum("bth,hg->btg", emb, model.w_ih_t,
                         precision=lax.Precision.HIGHEST) + model.bias
    gates_x_tbg = jnp.transpose(gates_x, (1, 0, 2))
    ref_out, ref_h, ref_c = _lstm_reference(gates_x_tbg, model.w_hh_t)
    ref_out = jnp.transpose(ref_out, (1, 0, 2))
    assert jnp.allclose(output, ref_out, atol=1e-4, rtol=1e-4)
    assert jnp.allclose(h_n[0], ref_h, atol=1e-4, rtol=1e-4)
    assert jnp.allclose(c_n[0], ref_c, atol=1e-4, rtol=1e-4)

    print("KERNEL_OK")
</pallas_src>

<mosaic_0001>
module attributes {stable_mosaic.version = 11 : i64} {
  func.func @_lstm_kernel(%arg0: i32, %arg1: memref<8x8x512xf32, #tpu.memory_space<vmem>>, %arg2: memref<128x512xbf16, #tpu.memory_space<vmem>>, %arg3: memref<8x8x128xf32, #tpu.memory_space<vmem>>, %arg4: memref<8x128xf32, #tpu.memory_space<vmem>>, %arg5: memref<8x128xf32, #tpu.memory_space<vmem>>, %arg6: memref<8x128xf32, #tpu.memory_space<vmem>>, %arg7: memref<8x128xf32, #tpu.memory_space<vmem>>) attributes {dimension_semantics = [#tpu.dimension_semantics<arbitrary>], iteration_bounds = array<i64: 1>, scalar_prefetch = 0 : i64, scratch_operands = 2 : i64, tpu.core_type = #tpu.core_type<tc>, window_params = [{transform_indices = @transform_0, window_bounds = array<i64: 8, 8, 512>}, {pipeline_mode = #tpu.pipeline_mode<synchronous>, transform_indices = @transform_1, window_bounds = array<i64: 128, 512>}, {transform_indices = @transform_2, window_bounds = array<i64: 8, 8, 128>}, {pipeline_mode = #tpu.pipeline_mode<synchronous>, transform_indices = @transform_3, window_bounds = array<i64: 8, 128>}, {pipeline_mode = #tpu.pipeline_mode<synchronous>, transform_indices = @transform_4, window_bounds = array<i64: 8, 128>}]} {
    %c0_i32 = arith.constant 0 : i32
    %0 = arith.cmpi eq, %arg0, %c0_i32 : i32
    %1 = arith.extui %0 : i1 to i32
    %c0_i32_0 = arith.constant 0 : i32
    %2 = arith.cmpi ne, %1, %c0_i32_0 : i32
    scf.if %2 {
      %cst_148 = arith.constant 0.000000e+00 : f32
      %359 = vector.broadcast %cst_148 : f32 to vector<8x128xf32>
      %c0_149 = arith.constant 0 : index
      %c0_150 = arith.constant 0 : index
      %360 = vector.load %arg6[%c0_149, %c0_150] : memref<8x128xf32, #tpu.memory_space<vmem>>, vector<8x128xf32>
      tpu.vector_store %arg6[%c0_149, %c0_150], %359 {strides = array<i32>} : memref<8x128xf32, #tpu.memory_space<vmem>>, vector<8x128xf32>,
      %cst_151 = arith.constant 0.000000e+00 : f32
      %361 = vector.broadcast %cst_151 : f32 to vector<8x128xf32>
      %c0_152 = arith.constant 0 : index
      %c0_153 = arith.constant 0 : index
      %362 = vector.load %arg7[%c0_152, %c0_153] : memref<8x128xf32, #tpu.memory_space<vmem>>, vector<8x128xf32>
      tpu.vector_store %arg7[%c0_152, %c0_153], %361 {strides = array<i32>} : memref<8x128xf32, #tpu.memory_space<vmem>>, vector<8x128xf32>,
    } else {
    }
    %c0 = arith.constant 0 : index
    %c0_1 = arith.constant 0 : index
    %3 = vector.load %arg2[%c0, %c0_1] : memref<128x512xbf16, #tpu.memory_space<vmem>>, vector<128x512xbf16>
    %c0_i32_2 = arith.constant 0 : i32
    %c0_3 = arith.constant 0 : index
    %c0_4 = arith.constant 0 : index
    %4 = vector.load %arg6[%c0_3, %c0_4] : memref<8x128xf32, #tpu.memory_space<vmem>>, vector<8x128xf32>
    %c0_5 = arith.constant 0 : index
    %c0_6 = arith.constant 0 : index
    %5 = vector.load %arg7[%c0_5, %c0_6] : memref<8x128xf32, #tpu.memory_space<vmem>>, vector<8x128xf32>
    %6 = arith.index_cast %c0_i32_2 : i32 to index
    %c0_7 = arith.constant 0 : index
    %c0_8 = arith.constant 0 : index
    %7 = vector.load %arg1[%6, %c0_7, %c0_8] : memref<8x8x512xf32, #tpu.memory_space<vmem>>, vector<1x8x512xf32>
    %8 = vector.shape_cast %7 : vector<1x8x512xf32> to vector<8x512xf32>
    %9 = arith.truncf %4 : vector<8x128xf32> to vector<8x128xbf16>
    %cst = arith.constant dense<0.000000e+00> : vector<8x512xf32>
    %10 = tpu.matmul %9, %3, %cst {dimension_numbers = #tpu.dot_dimension_numbers<[1], [0], [0], [1], [0, 0, 1, 1], [], []>} : vector<8x128xbf16>, vector<128x512xbf16>, vector<8x512xf32> -> vector<8x512xf32>
    %11 = arith.addf %8, %10 : vector<8x512xf32>
    %12 = vector.extract_strided_slice %11 {offsets = [0, 0], sizes = [8, 128], strides = [1, 1]} : vector<8x512xf32> to vector<8x128xf32>
    %13 = arith.negf %12 : vector<8x128xf32>
    %14 = math.exp %13 : vector<8x128xf32>
    %cst_9 = arith.constant 1.000000e+00 : f32
    %15 = vector.broadcast %cst_9 : f32 to vector<8x128xf32>
    %16 = arith.addf %15, %14 : vector<8x128xf32>
    %17 = arith.divf %15, %16 : vector<8x128xf32>
    %18 = vector.extract_strided_slice %11 {offsets = [0, 128], sizes = [8, 128], strides = [1, 1]} : vector<8x512xf32> to vector<8x128xf32>
    %19 = arith.negf %18 : vector<8x128xf32>
    %20 = math.exp %19 : vector<8x128xf32>
    %cst_10 = arith.constant 1.000000e+00 : f32
    %21 = vector.broadcast %cst_10 : f32 to vector<8x128xf32>
    %22 = arith.addf %21, %20 : vector<8x128xf32>
    %23 = arith.divf %21, %22 : vector<8x128xf32>
    %24 = vector.extract_strided_slice %11 {offsets = [0, 256], sizes = [8, 128], strides = [1, 1]} : vector<8x512xf32> to vector<8x128xf32>
    %25 = math.tanh %24 : vector<8x128xf32>
    %26 = vector.extract_strided_slice %11 {offsets = [0, 384], sizes = [8, 128], strides = [1, 1]} : vector<8x512xf32> to vector<8x128xf32>
    %27 = arith.negf %26 : vector<8x128xf32>
    %28 = math.exp %27 : vector<8x128xf32>
    %cst_11 = arith.constant 1.000000e+00 : f32
    %29 = vector.broadcast %cst_11 : f32 to vector<8x128xf32>
    %30 = arith.addf %29, %28 : vector<8x128xf32>
    %31 = arith.divf %29, %30 : vector<8x128xf32>
    %32 = arith.mulf %23, %5 : vector<8x128xf32>
    %33 = arith.mulf %17, %25 : vector<8x128xf32>
    %34 = arith.addf %32, %33 : vector<8x128xf32>
    %35 = math.tanh %34 : vector<8x128xf32>
    %36 = arith.mulf %31, %35 : vector<8x128xf32>
    %c8_i32 = arith.constant 8 : i32
    %37 = arith.muli %arg0, %c8_i32 : i32
    %38 = arith.addi %37, %c0_i32_2 : i32
    %c8_i32_12 = arith.constant 8 : i32
    %39 = arith.cmpi slt, %38, %c8_i32_12 : i32
    %40 = arith.select %39, %36, %4 : vector<8x128xf32>
    %c0_13 = arith.constant 0 : index
    %c0_14 = arith.constant 0 : index
    %41 = vector.load %arg6[%c0_13, %c0_14] : memref<8x128xf32, #tpu.memory_space<vmem>>, vector<8x128xf32>
    tpu.vector_store %arg6[%c0_13, %c0_14], %40 {strides = array<i32>} : memref<8x128xf32, #tpu.memory_space<vmem>>, vector<8x128xf32>,
    %42 = arith.select %39, %34, %5 : vector<8x128xf32>
    %c0_15 = arith.constant 0 : index
    %c0_16 = arith.constant 0 : index
    %43 = vector.load %arg7[%c0_15, %c0_16] : memref<8x128xf32, #tpu.memory_space<vmem>>, vector<8x128xf32>
    tpu.vector_store %arg7[%c0_15, %c0_16], %42 {strides = array<i32>} : memref<8x128xf32, #tpu.memory_space<vmem>>, vector<8x128xf32>,
    %44 = arith.index_cast %c0_i32_2 : i32 to index
    %c0_17 = arith.constant 0 : index
    %c0_18 = arith.constant 0 : index
    %45 = vector.load %arg3[%44, %c0_17, %c0_18] : memref<8x8x128xf32, #tpu.memory_space<vmem>>, vector<1x8x128xf32>
    %46 = vector.shape_cast %45 : vector<1x8x128xf32> to vector<8x128xf32>
    %47 = vector.shape_cast %36 : vector<8x128xf32> to vector<1x8x128xf32>
    tpu.vector_store %arg3[%44, %c0_17, %c0_18], %47 {strides = array<i32>} : memref<8x8x128xf32, #tpu.memory_space<vmem>>, vector<1x8x128xf32>,
    %c1_i32 = arith.constant 1 : i32
    %c0_19 = arith.constant 0 : index
    %c0_20 = arith.constant 0 : index
    %48 = vector.load %arg6[%c0_19, %c0_20] : memref<8x128xf32, #tpu.memory_space<vmem>>, vector<8x128xf32>
    %c0_21 = arith.constant 0 : index
    %c0_22 = arith.constant 0 : index
    %49 = vector.load %arg7[%c0_21, %c0_22] : memref<8x128xf32, #tpu.memory_space<vmem>>, vector<8x128xf32>
    %50 = arith.index_cast %c1_i32 : i32 to index
    %c0_23 = arith.constant 0 : index
    %c0_24 = arith.constant 0 : index
    %51 = vector.load %arg1[%50, %c0_23, %c0_24] : memref<8x8x512xf32, #tpu.memory_space<vmem>>, vector<1x8x512xf32>
    %52 = vector.shape_cast %51 : vector<1x8x512xf32> to vector<8x512xf32>
    %53 = arith.truncf %48 : vector<8x128xf32> to vector<8x128xbf16>
    %cst_25 = arith.constant dense<0.000000e+00> : vector<8x512xf32>
    %54 = tpu.matmul %53, %3, %cst_25 {dimension_numbers = #tpu.dot_dimension_numbers<[1], [0], [0], [1], [0, 0, 1, 1], [], []>} : vector<8x128xbf16>, vector<128x512xbf16>, vector<8x512xf32> -> vector<8x512xf32>
    %55 = arith.addf %52, %54 : vector<8x512xf32>
    %56 = vector.extract_strided_slice %55 {offsets = [0, 0], sizes = [8, 128], strides = [1, 1]} : vector<8x512xf32> to vector<8x128xf32>
    %57 = arith.negf %56 : vector<8x128xf32>
    %58 = math.exp %57 : vector<8x128xf32>
    %cst_26 = arith.constant 1.000000e+00 : f32
    %59 = vector.broadcast %cst_26 : f32 to vector<8x128xf32>
    %60 = arith.addf %59, %58 : vector<8x128xf32>
    %61 = arith.divf %59, %60 : vector<8x128xf32>
    %62 = vector.extract_strided_slice %55 {offsets = [0, 128], sizes = [8, 128], strides = [1, 1]} : vector<8x512xf32> to vector<8x128xf32>
    %63 = arith.negf %62 : vector<8x128xf32>
    %64 = math.exp %63 : vector<8x128xf32>
    %cst_27 = arith.constant 1.000000e+00 : f32
    %65 = vector.broadcast %cst_27 : f32 to vector<8x128xf32>
    %66 = arith.addf %65, %64 : vector<8x128xf32>
    %67 = arith.divf %65, %66 : vector<8x128xf32>
    %68 = vector.extract_strided_slice %55 {offsets = [0, 256], sizes = [8, 128], strides = [1, 1]} : vector<8x512xf32> to vector<8x128xf32>
    %69 = math.tanh %68 : vector<8x128xf32>
    %70 = vector.extract_strided_slice %55 {offsets = [0, 384], sizes = [8, 128], strides = [1, 1]} : vector<8x512xf32> to vector<8x128xf32>
    %71 = arith.negf %70 : vector<8x128xf32>
    %72 = math.exp %71 : vector<8x128xf32>
    %cst_28 = arith.constant 1.000000e+00 : f32
    %73 = vector.broadcast %cst_28 : f32 to vector<8x128xf32>
    %74 = arith.addf %73, %72 : vector<8x128xf32>
    %75 = arith.divf %73, %74 : vector<8x128xf32>
    %76 = arith.mulf %67, %49 : vector<8x128xf32>
    %77 = arith.mulf %61, %69 : vector<8x128xf32>
    %78 = arith.addf %76, %77 : vector<8x128xf32>
    %79 = math.tanh %78 : vector<8x128xf32>
    %80 = arith.mulf %75, %79 : vector<8x128xf32>
    %c8_i32_29 = arith.constant 8 : i32
    %81 = arith.muli %arg0, %c8_i32_29 : i32
    %82 = arith.addi %81, %c1_i32 : i32
    %c8_i32_30 = arith.constant 8 : i32
    %83 = arith.cmpi slt, %82, %c8_i32_30 : i32
    %84 = arith.select %83, %80, %48 : vector<8x128xf32>
    %c0_31 = arith.constant 0 : index
    %c0_32 = arith.constant 0 : index
    %85 = vector.load %arg6[%c0_31, %c0_32] : memref<8x128xf32, #tpu.memory_space<vmem>>, vector<8x128xf32>
    tpu.vector_store %arg6[%c0_31, %c0_32], %84 {strides = array<i32>} : memref<8x128xf32, #tpu.memory_space<vmem>>, vector<8x128xf32>,
    %86 = arith.select %83, %78, %49 : vector<8x128xf32>
    %c0_33 = arith.constant 0 : index
    %c0_34 = arith.constant 0 : index
    %87 = vector.load %arg7[%c0_33, %c0_34] : memref<8x128xf32, #tpu.memory_space<vmem>>, vector<8x128xf32>
    tpu.vector_store %arg7[%c0_33, %c0_34], %86 {strides = array<i32>} : memref<8x128xf32, #tpu.memory_space<vmem>>, vector<8x128xf32>,
    %88 = arith.index_cast %c1_i32 : i32 to index
    %c0_35 = arith.constant 0 : index
    %c0_36 = arith.constant 0 : index
    %89 = vector.load %arg3[%88, %c0_35, %c0_36] : memref<8x8x128xf32, #tpu.memory_space<vmem>>, vector<1x8x128xf32>
    %90 = vector.shape_cast %89 : vector<1x8x128xf32> to vector<8x128xf32>
    %91 = vector.shape_cast %80 : vector<8x128xf32> to vector<1x8x128xf32>
    tpu.vector_store %arg3[%88, %c0_35, %c0_36], %91 {strides = array<i32>} : memref<8x8x128xf32, #tpu.memory_space<vmem>>, vector<1x8x128xf32>,
    %c2_i32 = arith.constant 2 : i32
    %c0_37 = arith.constant 0 : index
    %c0_38 = arith.constant 0 : index
    %92 = vector.load %arg6[%c0_37, %c0_38] : memref<8x128xf32, #tpu.memory_space<vmem>>, vector<8x128xf32>
    %c0_39 = arith.constant 0 : index
    %c0_40 = arith.constant 0 : index
    %93 = vector.load %arg7[%c0_39, %c0_40] : memref<8x128xf32, #tpu.memory_space<vmem>>, vector<8x128xf32>
    %94 = arith.index_cast %c2_i32 : i32 to index
    %c0_41 = arith.constant 0 : index
    %c0_42 = arith.constant 0 : index
    %95 = vector.load %arg1[%94, %c0_41, %c0_42] : memref<8x8x512xf32, #tpu.memory_space<vmem>>, vector<1x8x512xf32>
    %96 = vector.shape_cast %95 : vector<1x8x512xf32> to vector<8x512xf32>
    %97 = arith.truncf %92 : vector<8x128xf32> to vector<8x128xbf16>
    %cst_43 = arith.constant dense<0.000000e+00> : vector<8x512xf32>
    %98 = tpu.matmul %97, %3, %cst_43 {dimension_numbers = #tpu.dot_dimension_numbers<[1], [0], [0], [1], [0, 0, 1, 1], [], []>} : vector<8x128xbf16>, vector<128x512xbf16>, vector<8x512xf32> -> vector<8x512xf32>
    %99 = arith.addf %96, %98 : vector<8x512xf32>
    %100 = vector.extract_strided_slice %99 {offsets = [0, 0], sizes = [8, 128], strides = [1, 1]} : vector<8x512xf32> to vector<8x128xf32>
    %101 = arith.negf %100 : vector<8x128xf32>
    %102 = math.exp %101 : vector<8x128xf32>
    %cst_44 = arith.constant 1.000000e+00 : f32
    %103 = vector.broadcast %cst_44 : f32 to vector<8x128xf32>
    %104 = arith.addf %103, %102 : vector<8x128xf32>
    %105 = arith.divf %103, %104 : vector<8x128xf32>
    %106 = vector.extract_strided_slice %99 {offsets = [0, 128], sizes = [8, 128], strides = [1, 1]} : vector<8x512xf32> to vector<8x128xf32>
    %107 = arith.negf %106 : vector<8x128xf32>
    %108 = math.exp %107 : vector<8x128xf32>
    %cst_45 = arith.constant 1.000000e+00 : f32
    %109 = vector.broadcast %cst_45 : f32 to vector<8x128xf32>
    %110 = arith.addf %109, %108 : vector<8x128xf32>
    %111 = arith.divf %109, %110 : vector<8x128xf32>
    %112 = vector.extract_strided_slice %99 {offsets = [0, 256], sizes = [8, 128], strides = [1, 1]} : vector<8x512xf32> to vector<8x128xf32>
    %113 = math.tanh %112 : vector<8x128xf32>
    %114 = vector.extract_strided_slice %99 {offsets = [0, 384], sizes = [8, 128], strides = [1, 1]} : vector<8x512xf32> to vector<8x128xf32>
    %115 = arith.negf %114 : vector<8x128xf32>
    %116 = math.exp %115 : vector<8x128xf32>
    %cst_46 = arith.constant 1.000000e+00 : f32
    %117 = vector.broadcast %cst_46 : f32 to vector<8x128xf32>
    %118 = arith.addf %117, %116 : vector<8x128xf32>
    %119 = arith.divf %117, %118 : vector<8x128xf32>
    %120 = arith.mulf %111, %93 : vector<8x128xf32>
    %121 = arith.mulf %105, %113 : vector<8x128xf32>
    %122 = arith.addf %120, %121 : vector<8x128xf32>
    %123 = math.tanh %122 : vector<8x128xf32>
    %124 = arith.mulf %119, %123 : vector<8x128xf32>
    %c8_i32_47 = arith.constant 8 : i32
    %125 = arith.muli %arg0, %c8_i32_47 : i32
    %126 = arith.addi %125, %c2_i32 : i32
    %c8_i32_48 = arith.constant 8 : i32
    %127 = arith.cmpi slt, %126, %c8_i32_48 : i32
    %128 = arith.select %127, %124, %92 : vector<8x128xf32>
    %c0_49 = arith.constant 0 : index
    %c0_50 = arith.constant 0 : index
    %129 = vector.load %arg6[%c0_49, %c0_50] : memref<8x128xf32, #tpu.memory_space<vmem>>, vector<8x128xf32>
    tpu.vector_store %arg6[%c0_49, %c0_50], %128 {strides = array<i32>} : memref<8x128xf32, #tpu.memory_space<vmem>>, vector<8x128xf32>,
    %130 = arith.select %127, %122, %93 : vector<8x128xf32>
    %c0_51 = arith.constant 0 : index
    %c0_52 = arith.constant 0 : index
    %131 = vector.load %arg7[%c0_51, %c0_52] : memref<8x128xf32, #tpu.memory_space<vmem>>, vector<8x128xf32>
    tpu.vector_store %arg7[%c0_51, %c0_52], %130 {strides = array<i32>} : memref<8x128xf32, #tpu.memory_space<vmem>>, vector<8x128xf32>,
    %132 = arith.index_cast %c2_i32 : i32 to index
    %c0_53 = arith.constant 0 : index
    %c0_54 = arith.constant 0 : index
    %133 = vector.load %arg3[%132, %c0_53, %c0_54] : memref<8x8x128xf32, #tpu.memory_space<vmem>>, vector<1x8x128xf32>
    %134 = vector.shape_cast %133 : vector<1x8x128xf32> to vector<8x128xf32>
    %135 = vector.shape_cast %124 : vector<8x128xf32> to vector<1x8x128xf32>
    tpu.vector_store %arg3[%132, %c0_53, %c0_54], %135 {strides = array<i32>} : memref<8x8x128xf32, #tpu.memory_space<vmem>>, vector<1x8x128xf32>,
    %c3_i32 = arith.constant 3 : i32
    %c0_55 = arith.constant 0 : index
    %c0_56 = arith.constant 0 : index
    %136 = vector.load %arg6[%c0_55, %c0_56] : memref<8x128xf32, #tpu.memory_space<vmem>>, vector<8x128xf32>
    %c0_57 = arith.constant 0 : index
    %c0_58 = arith.constant 0 : index
    %137 = vector.load %arg7[%c0_57, %c0_58] : memref<8x128xf32, #tpu.memory_space<vmem>>, vector<8x128xf32>
    %138 = arith.index_cast %c3_i32 : i32 to index
    %c0_59 = arith.constant 0 : index
    %c0_60 = arith.constant 0 : index
    %139 = vector.load %arg1[%138, %c0_59, %c0_60] : memref<8x8x512xf32, #tpu.memory_space<vmem>>, vector<1x8x512xf32>
    %140 = vector.shape_cast %139 : vector<1x8x512xf32> to vector<8x512xf32>
    %141 = arith.truncf %136 : vector<8x128xf32> to vector<8x128xbf16>
    %cst_61 = arith.constant dense<0.000000e+00> : vector<8x512xf32>
    %142 = tpu.matmul %141, %3, %cst_61 {dimension_numbers = #tpu.dot_dimension_numbers<[1], [0], [0], [1], [0, 0, 1, 1], [], []>} : vector<8x128xbf16>, vector<128x512xbf16>, vector<8x512xf32> -> vector<8x512xf32>
    %143 = arith.addf %140, %142 : vector<8x512xf32>
    %144 = vector.extract_strided_slice %143 {offsets = [0, 0], sizes = [8, 128], strides = [1, 1]} : vector<8x512xf32> to vector<8x128xf32>
    %145 = arith.negf %144 : vector<8x128xf32>
    %146 = math.exp %145 : vector<8x128xf32>
    %cst_62 = arith.constant 1.000000e+00 : f32
    %147 = vector.broadcast %cst_62 : f32 to vector<8x128xf32>
    %148 = arith.addf %147, %146 : vector<8x128xf32>
    %149 = arith.divf %147, %148 : vector<8x128xf32>
    %150 = vector.extract_strided_slice %143 {offsets = [0, 128], sizes = [8, 128], strides = [1, 1]} : vector<8x512xf32> to vector<8x128xf32>
    %151 = arith.negf %150 : vector<8x128xf32>
    %152 = math.exp %151 : vector<8x128xf32>
    %cst_63 = arith.constant 1.000000e+00 : f32
    %153 = vector.broadcast %cst_63 : f32 to vector<8x128xf32>
    %154 = arith.addf %153, %152 : vector<8x128xf32>
    %155 = arith.divf %153, %154 : vector<8x128xf32>
    %156 = vector.extract_strided_slice %143 {offsets = [0, 256], sizes = [8, 128], strides = [1, 1]} : vector<8x512xf32> to vector<8x128xf32>
    %157 = math.tanh %156 : vector<8x128xf32>
    %158 = vector.extract_strided_slice %143 {offsets = [0, 384], sizes = [8, 128], strides = [1, 1]} : vector<8x512xf32> to vector<8x128xf32>
    %159 = arith.negf %158 : vector<8x128xf32>
    %160 = math.exp %159 : vector<8x128xf32>
    %cst_64 = arith.constant 1.000000e+00 : f32
    %161 = vector.broadcast %cst_64 : f32 to vector<8x128xf32>
    %162 = arith.addf %161, %160 : vector<8x128xf32>
    %163 = arith.divf %161, %162 : vector<8x128xf32>
    %164 = arith.mulf %155, %137 : vector<8x128xf32>
    %165 = arith.mulf %149, %157 : vector<8x128xf32>
    %166 = arith.addf %164, %165 : vector<8x128xf32>
    %167 = math.tanh %166 : vector<8x128xf32>
    %168 = arith.mulf %163, %167 : vector<8x128xf32>
    %c8_i32_65 = arith.constant 8 : i32
    %169 = arith.muli %arg0, %c8_i32_65 : i32
    %170 = arith.addi %169, %c3_i32 : i32
    %c8_i32_66 = arith.constant 8 : i32
    %171 = arith.cmpi slt, %170, %c8_i32_66 : i32
    %172 = arith.select %171, %168, %136 : vector<8x128xf32>
    %c0_67 = arith.constant 0 : index
    %c0_68 = arith.constant 0 : index
    %173 = vector.load %arg6[%c0_67, %c0_68] : memref<8x128xf32, #tpu.memory_space<vmem>>, vector<8x128xf32>
    tpu.vector_store %arg6[%c0_67, %c0_68], %172 {strides = array<i32>} : memref<8x128xf32, #tpu.memory_space<vmem>>, vector<8x128xf32>,
    %174 = arith.select %171, %166, %137 : vector<8x128xf32>
    %c0_69 = arith.constant 0 : index
    %c0_70 = arith.constant 0 : index
    %175 = vector.load %arg7[%c0_69, %c0_70] : memref<8x128xf32, #tpu.memory_space<vmem>>, vector<8x128xf32>
    tpu.vector_store %arg7[%c0_69, %c0_70], %174 {strides = array<i32>} : memref<8x128xf32, #tpu.memory_space<vmem>>, vector<8x128xf32>,
    %176 = arith.index_cast %c3_i32 : i32 to index
    %c0_71 = arith.constant 0 : index
    %c0_72 = arith.constant 0 : index
    %177 = vector.load %arg3[%176, %c0_71, %c0_72] : memref<8x8x128xf32, #tpu.memory_space<vmem>>, vector<1x8x128xf32>
    %178 = vector.shape_cast %177 : vector<1x8x128xf32> to vector<8x128xf32>
    %179 = vector.shape_cast %168 : vector<8x128xf32> to vector<1x8x128xf32>
    tpu.vector_store %arg3[%176, %c0_71, %c0_72], %179 {strides = array<i32>} : memref<8x8x128xf32, #tpu.memory_space<vmem>>, vector<1x8x128xf32>,
    %c4_i32 = arith.constant 4 : i32
    %c0_73 = arith.constant 0 : index
    %c0_74 = arith.constant 0 : index
    %180 = vector.load %arg6[%c0_73, %c0_74] : memref<8x128xf32, #tpu.memory_space<vmem>>, vector<8x128xf32>
    %c0_75 = arith.constant 0 : index
    %c0_76 = arith.constant 0 : index
    %181 = vector.load %arg7[%c0_75, %c0_76] : memref<8x128xf32, #tpu.memory_space<vmem>>, vector<8x128xf32>
    %182 = arith.index_cast %c4_i32 : i32 to index
    %c0_77 = arith.constant 0 : index
    %c0_78 = arith.constant 0 : index
    %183 = vector.load %arg1[%182, %c0_77, %c0_78] : memref<8x8x512xf32, #tpu.memory_space<vmem>>, vector<1x8x512xf32>
    %184 = vector.shape_cast %183 : vector<1x8x512xf32> to vector<8x512xf32>
    %185 = arith.truncf %180 : vector<8x128xf32> to vector<8x128xbf16>
    %cst_79 = arith.constant dense<0.000000e+00> : vector<8x512xf32>
    %186 = tpu.matmul %185, %3, %cst_79 {dimension_numbers = #tpu.dot_dimension_numbers<[1], [0], [0], [1], [0, 0, 1, 1], [], []>} : vector<8x128xbf16>, vector<128x512xbf16>, vector<8x512xf32> -> vector<8x512xf32>
    %187 = arith.addf %184, %186 : vector<8x512xf32>
    %188 = vector.extract_strided_slice %187 {offsets = [0, 0], sizes = [8, 128], strides = [1, 1]} : vector<8x512xf32> to vector<8x128xf32>
    %189 = arith.negf %188 : vector<8x128xf32>
    %190 = math.exp %189 : vector<8x128xf32>
    %cst_80 = arith.constant 1.000000e+00 : f32
    %191 = vector.broadcast %cst_80 : f32 to vector<8x128xf32>
    %192 = arith.addf %191, %190 : vector<8x128xf32>
    %193 = arith.divf %191, %192 : vector<8x128xf32>
    %194 = vector.extract_strided_slice %187 {offsets = [0, 128], sizes = [8, 128], strides = [1, 1]} : vector<8x512xf32> to vector<8x128xf32>
    %195 = arith.negf %194 : vector<8x128xf32>
    %196 = math.exp %195 : vector<8x128xf32>
    %cst_81 = arith.constant 1.000000e+00 : f32
    %197 = vector.broadcast %cst_81 : f32 to vector<8x128xf32>
    %198 = arith.addf %197, %196 : vector<8x128xf32>
    %199 = arith.divf %197, %198 : vector<8x128xf32>
    %200 = vector.extract_strided_slice %187 {offsets = [0, 256], sizes = [8, 128], strides = [1, 1]} : vector<8x512xf32> to vector<8x128xf32>
    %201 = math.tanh %200 : vector<8x128xf32>
    %202 = vector.extract_strided_slice %187 {offsets = [0, 384], sizes = [8, 128], strides = [1, 1]} : vector<8x512xf32> to vector<8x128xf32>
    %203 = arith.negf %202 : vector<8x128xf32>
    %204 = math.exp %203 : vector<8x128xf32>
    %cst_82 = arith.constant 1.000000e+00 : f32
    %205 = vector.broadcast %cst_82 : f32 to vector<8x128xf32>
    %206 = arith.addf %205, %204 : vector<8x128xf32>
    %207 = arith.divf %205, %206 : vector<8x128xf32>
    %208 = arith.mulf %199, %181 : vector<8x128xf32>
    %209 = arith.mulf %193, %201 : vector<8x128xf32>
    %210 = arith.addf %208, %209 : vector<8x128xf32>
    %211 = math.tanh %210 : vector<8x128xf32>
    %212 = arith.mulf %207, %211 : vector<8x128xf32>
    %c8_i32_83 = arith.constant 8 : i32
    %213 = arith.muli %arg0, %c8_i32_83 : i32
    %214 = arith.addi %213, %c4_i32 : i32
    %c8_i32_84 = arith.constant 8 : i32
    %215 = arith.cmpi slt, %214, %c8_i32_84 : i32
    %216 = arith.select %215, %212, %180 : vector<8x128xf32>
    %c0_85 = arith.constant 0 : index
    %c0_86 = arith.constant 0 : index
    %217 = vector.load %arg6[%c0_85, %c0_86] : memref<8x128xf32, #tpu.memory_space<vmem>>, vector<8x128xf32>
    tpu.vector_store %arg6[%c0_85, %c0_86], %216 {strides = array<i32>} : memref<8x128xf32, #tpu.memory_space<vmem>>, vector<8x128xf32>,
    %218 = arith.select %215, %210, %181 : vector<8x128xf32>
    %c0_87 = arith.constant 0 : index
    %c0_88 = arith.constant 0 : index
    %219 = vector.load %arg7[%c0_87, %c0_88] : memref<8x128xf32, #tpu.memory_space<vmem>>, vector<8x128xf32>
    tpu.vector_store %arg7[%c0_87, %c0_88], %218 {strides = array<i32>} : memref<8x128xf32, #tpu.memory_space<vmem>>, vector<8x128xf32>,
    %220 = arith.index_cast %c4_i32 : i32 to index
    %c0_89 = arith.constant 0 : index
    %c0_90 = arith.constant 0 : index
    %221 = vector.load %arg3[%220, %c0_89, %c0_90] : memref<8x8x128xf32, #tpu.memory_space<vmem>>, vector<1x8x128xf32>
    %222 = vector.shape_cast %221 : vector<1x8x128xf32> to vector<8x128xf32>
    %223 = vector.shape_cast %212 : vector<8x128xf32> to vector<1x8x128xf32>
    tpu.vector_store %arg3[%220, %c0_89, %c0_90], %223 {strides = array<i32>} : memref<8x8x128xf32, #tpu.memory_space<vmem>>, vector<1x8x128xf32>,
    %c5_i32 = arith.constant 5 : i32
    %c0_91 = arith.constant 0 : index
    %c0_92 = arith.constant 0 : index
    %224 = vector.load %arg6[%c0_91, %c0_92] : memref<8x128xf32, #tpu.memory_space<vmem>>, vector<8x128xf32>
    %c0_93 = arith.constant 0 : index
    %c0_94 = arith.constant 0 : index
    %225 = vector.load %arg7[%c0_93, %c0_94] : memref<8x128xf32, #tpu.memory_space<vmem>>, vector<8x128xf32>
    %226 = arith.index_cast %c5_i32 : i32 to index
    %c0_95 = arith.constant 0 : index
    %c0_96 = arith.constant 0 : index
    %227 = vector.load %arg1[%226, %c0_95, %c0_96] : memref<8x8x512xf32, #tpu.memory_space<vmem>>, vector<1x8x512xf32>
    %228 = vector.shape_cast %227 : vector<1x8x512xf32> to vector<8x512xf32>
    %229 = arith.truncf %224 : vector<8x128xf32> to vector<8x128xbf16>
    %cst_97 = arith.constant dense<0.000000e+00> : vector<8x512xf32>
    %230 = tpu.matmul %229, %3, %cst_97 {dimension_numbers = #tpu.dot_dimension_numbers<[1], [0], [0], [1], [0, 0, 1, 1], [], []>} : vector<8x128xbf16>, vector<128x512xbf16>, vector<8x512xf32> -> vector<8x512xf32>
    %231 = arith.addf %228, %230 : vector<8x512xf32>
    %232 = vector.extract_strided_slice %231 {offsets = [0, 0], sizes = [8, 128], strides = [1, 1]} : vector<8x512xf32> to vector<8x128xf32>
    %233 = arith.negf %232 : vector<8x128xf32>
    %234 = math.exp %233 : vector<8x128xf32>
    %cst_98 = arith.constant 1.000000e+00 : f32
    %235 = vector.broadcast %cst_98 : f32 to vector<8x128xf32>
    %236 = arith.addf %235, %234 : vector<8x128xf32>
    %237 = arith.divf %235, %236 : vector<8x128xf32>
    %238 = vector.extract_strided_slice %231 {offsets = [0, 128], sizes = [8, 128], strides = [1, 1]} : vector<8x512xf32> to vector<8x128xf32>
    %239 = arith.negf %238 : vector<8x128xf32>
    %240 = math.exp %239 : vector<8x128xf32>
    %cst_99 = arith.constant 1.000000e+00 : f32
    %241 = vector.broadcast %cst_99 : f32 to vector<8x128xf32>
    %242 = arith.addf %241, %240 : vector<8x128xf32>
    %243 = arith.divf %241, %242 : vector<8x128xf32>
    %244 = vector.extract_strided_slice %231 {offsets = [0, 256], sizes = [8, 128], strides = [1, 1]} : vector<8x512xf32> to vector<8x128xf32>
    %245 = math.tanh %244 : vector<8x128xf32>
    %246 = vector.extract_strided_slice %231 {offsets = [0, 384], sizes = [8, 128], strides = [1, 1]} : vector<8x512xf32> to vector<8x128xf32>
    %247 = arith.negf %246 : vector<8x128xf32>
    %248 = math.exp %247 : vector<8x128xf32>
    %cst_100 = arith.constant 1.000000e+00 : f32
    %249 = vector.broadcast %cst_100 : f32 to vector<8x128xf32>
    %250 = arith.addf %249, %248 : vector<8x128xf32>
    %251 = arith.divf %249, %250 : vector<8x128xf32>
    %252 = arith.mulf %243, %225 : vector<8x128xf32>
    %253 = arith.mulf %237, %245 : vector<8x128xf32>
    %254 = arith.addf %252, %253 : vector<8x128xf32>
    %255 = math.tanh %254 : vector<8x128xf32>
    %256 = arith.mulf %251, %255 : vector<8x128xf32>
    %c8_i32_101 = arith.constant 8 : i32
    %257 = arith.muli %arg0, %c8_i32_101 : i32
    %258 = arith.addi %257, %c5_i32 : i32
    %c8_i32_102 = arith.constant 8 : i32
    %259 = arith.cmpi slt, %258, %c8_i32_102 : i32
    %260 = arith.select %259, %256, %224 : vector<8x128xf32>
    %c0_103 = arith.constant 0 : index
    %c0_104 = arith.constant 0 : index
    %261 = vector.load %arg6[%c0_103, %c0_104] : memref<8x128xf32, #tpu.memory_space<vmem>>, vector<8x128xf32>
    tpu.vector_store %arg6[%c0_103, %c0_104], %260 {strides = array<i32>} : memref<8x128xf32, #tpu.memory_space<vmem>>, vector<8x128xf32>,
    %262 = arith.select %259, %254, %225 : vector<8x128xf32>
    %c0_105 = arith.constant 0 : index
    %c0_106 = arith.constant 0 : index
    %263 = vector.load %arg7[%c0_105, %c0_106] : memref<8x128xf32, #tpu.memory_space<vmem>>, vector<8x128xf32>
    tpu.vector_store %arg7[%c0_105, %c0_106], %262 {strides = array<i32>} : memref<8x128xf32, #tpu.memory_space<vmem>>, vector<8x128xf32>,
    %264 = arith.index_cast %c5_i32 : i32 to index
    %c0_107 = arith.constant 0 : index
    %c0_108 = arith.constant 0 : index
    %265 = vector.load %arg3[%264, %c0_107, %c0_108] : memref<8x8x128xf32, #tpu.memory_space<vmem>>, vector<1x8x128xf32>
    %266 = vector.shape_cast %265 : vector<1x8x128xf32> to vector<8x128xf32>
    %267 = vector.shape_cast %256 : vector<8x128xf32> to vector<1x8x128xf32>
    tpu.vector_store %arg3[%264, %c0_107, %c0_108], %267 {strides = array<i32>} : memref<8x8x128xf32, #tpu.memory_space<vmem>>, vector<1x8x128xf32>,
    %c6_i32 = arith.constant 6 : i32
    %c0_109 = arith.constant 0 : index
    %c0_110 = arith.constant 0 : index
    %268 = vector.load %arg6[%c0_109, %c0_110] : memref<8x128xf32, #tpu.memory_space<vmem>>, vector<8x128xf32>
    %c0_111 = arith.constant 0 : index
    %c0_112 = arith.constant 0 : index
    %269 = vector.load %arg7[%c0_111, %c0_112] : memref<8x128xf32, #tpu.memory_space<vmem>>, vector<8x128xf32>
    %270 = arith.index_cast %c6_i32 : i32 to index
    %c0_113 = arith.constant 0 : index
    %c0_114 = arith.constant 0 : index
    %271 = vector.load %arg1[%270, %c0_113, %c0_114] : memref<8x8x512xf32, #tpu.memory_space<vmem>>, vector<1x8x512xf32>
    %272 = vector.shape_cast %271 : vector<1x8x512xf32> to vector<8x512xf32>
    %273 = arith.truncf %268 : vector<8x128xf32> to vector<8x128xbf16>
    %cst_115 = arith.constant dense<0.000000e+00> : vector<8x512xf32>
    %274 = tpu.matmul %273, %3, %cst_115 {dimension_numbers = #tpu.dot_dimension_numbers<[1], [0], [0], [1], [0, 0, 1, 1], [], []>} : vector<8x128xbf16>, vector<128x512xbf16>, vector<8x512xf32> -> vector<8x512xf32>
    %275 = arith.addf %272, %274 : vector<8x512xf32>
    %276 = vector.extract_strided_slice %275 {offsets = [0, 0], sizes = [8, 128], strides = [1, 1]} : vector<8x512xf32> to vector<8x128xf32>
    %277 = arith.negf %276 : vector<8x128xf32>
    %278 = math.exp %277 : vector<8x128xf32>
    %cst_116 = arith.constant 1.000000e+00 : f32
    %279 = vector.broadcast %cst_116 : f32 to vector<8x128xf32>
    %280 = arith.addf %279, %278 : vector<8x128xf32>
    %281 = arith.divf %279, %280 : vector<8x128xf32>
    %282 = vector.extract_strided_slice %275 {offsets = [0, 128], sizes = [8, 128], strides = [1, 1]} : vector<8x512xf32> to vector<8x128xf32>
    %283 = arith.negf %282 : vector<8x128xf32>
    %284 = math.exp %283 : vector<8x128xf32>
    %cst_117 = arith.constant 1.000000e+00 : f32
    %285 = vector.broadcast %cst_117 : f32 to vector<8x128xf32>
    %286 = arith.addf %285, %284 : vector<8x128xf32>
    %287 = arith.divf %285, %286 : vector<8x128xf32>
    %288 = vector.extract_strided_slice %275 {offsets = [0, 256], sizes = [8, 128], strides = [1, 1]} : vector<8x512xf32> to vector<8x128xf32>
    %289 = math.tanh %288 : vector<8x128xf32>
    %290 = vector.extract_strided_slice %275 {offsets = [0, 384], sizes = [8, 128], strides = [1, 1]} : vector<8x512xf32> to vector<8x128xf32>
    %291 = arith.negf %290 : vector<8x128xf32>
    %292 = math.exp %291 : vector<8x128xf32>
    %cst_118 = arith.constant 1.000000e+00 : f32
    %293 = vector.broadcast %cst_118 : f32 to vector<8x128xf32>
    %294 = arith.addf %293, %292 : vector<8x128xf32>
    %295 = arith.divf %293, %294 : vector<8x128xf32>
    %296 = arith.mulf %287, %269 : vector<8x128xf32>
    %297 = arith.mulf %281, %289 : vector<8x128xf32>
    %298 = arith.addf %296, %297 : vector<8x128xf32>
    %299 = math.tanh %298 : vector<8x128xf32>
    %300 = arith.mulf %295, %299 : vector<8x128xf32>
    %c8_i32_119 = arith.constant 8 : i32
    %301 = arith.muli %arg0, %c8_i32_119 : i32
    %302 = arith.addi %301, %c6_i32 : i32
    %c8_i32_120 = arith.constant 8 : i32
    %303 = arith.cmpi slt, %302, %c8_i32_120 : i32
    %304 = arith.select %303, %300, %268 : vector<8x128xf32>
    %c0_121 = arith.constant 0 : index
    %c0_122 = arith.constant 0 : index
    %305 = vector.load %arg6[%c0_121, %c0_122] : memref<8x128xf32, #tpu.memory_space<vmem>>, vector<8x128xf32>
    tpu.vector_store %arg6[%c0_121, %c0_122], %304 {strides = array<i32>} : memref<8x128xf32, #tpu.memory_space<vmem>>, vector<8x128xf32>,
    %306 = arith.select %303, %298, %269 : vector<8x128xf32>
    %c0_123 = arith.constant 0 : index
    %c0_124 = arith.constant 0 : index
    %307 = vector.load %arg7[%c0_123, %c0_124] : memref<8x128xf32, #tpu.memory_space<vmem>>, vector<8x128xf32>
    tpu.vector_store %arg7[%c0_123, %c0_124], %306 {strides = array<i32>} : memref<8x128xf32, #tpu.memory_space<vmem>>, vector<8x128xf32>,
    %308 = arith.index_cast %c6_i32 : i32 to index
    %c0_125 = arith.constant 0 : index
    %c0_126 = arith.constant 0 : index
    %309 = vector.load %arg3[%308, %c0_125, %c0_126] : memref<8x8x128xf32, #tpu.memory_space<vmem>>, vector<1x8x128xf32>
    %310 = vector.shape_cast %309 : vector<1x8x128xf32> to vector<8x128xf32>
    %311 = vector.shape_cast %300 : vector<8x128xf32> to vector<1x8x128xf32>
    tpu.vector_store %arg3[%308, %c0_125, %c0_126], %311 {strides = array<i32>} : memref<8x8x128xf32, #tpu.memory_space<vmem>>, vector<1x8x128xf32>,
    %c7_i32 = arith.constant 7 : i32
    %c0_127 = arith.constant 0 : index
    %c0_128 = arith.constant 0 : index
    %312 = vector.load %arg6[%c0_127, %c0_128] : memref<8x128xf32, #tpu.memory_space<vmem>>, vector<8x128xf32>
    %c0_129 = arith.constant 0 : index
    %c0_130 = arith.constant 0 : index
    %313 = vector.load %arg7[%c0_129, %c0_130] : memref<8x128xf32, #tpu.memory_space<vmem>>, vector<8x128xf32>
    %314 = arith.index_cast %c7_i32 : i32 to index
    %c0_131 = arith.constant 0 : index
    %c0_132 = arith.constant 0 : index
    %315 = vector.load %arg1[%314, %c0_131, %c0_132] : memref<8x8x512xf32, #tpu.memory_space<vmem>>, vector<1x8x512xf32>
    %316 = vector.shape_cast %315 : vector<1x8x512xf32> to vector<8x512xf32>
    %317 = arith.truncf %312 : vector<8x128xf32> to vector<8x128xbf16>
    %cst_133 = arith.constant dense<0.000000e+00> : vector<8x512xf32>
    %318 = tpu.matmul %317, %3, %cst_133 {dimension_numbers = #tpu.dot_dimension_numbers<[1], [0], [0], [1], [0, 0, 1, 1], [], []>} : vector<8x128xbf16>, vector<128x512xbf16>, vector<8x512xf32> -> vector<8x512xf32>
    %319 = arith.addf %316, %318 : vector<8x512xf32>
    %320 = vector.extract_strided_slice %319 {offsets = [0, 0], sizes = [8, 128], strides = [1, 1]} : vector<8x512xf32> to vector<8x128xf32>
    %321 = arith.negf %320 : vector<8x128xf32>
    %322 = math.exp %321 : vector<8x128xf32>
    %cst_134 = arith.constant 1.000000e+00 : f32
    %323 = vector.broadcast %cst_134 : f32 to vector<8x128xf32>
    %324 = arith.addf %323, %322 : vector<8x128xf32>
    %325 = arith.divf %323, %324 : vector<8x128xf32>
    %326 = vector.extract_strided_slice %319 {offsets = [0, 128], sizes = [8, 128], strides = [1, 1]} : vector<8x512xf32> to vector<8x128xf32>
    %327 = arith.negf %326 : vector<8x128xf32>
    %328 = math.exp %327 : vector<8x128xf32>
    %cst_135 = arith.constant 1.000000e+00 : f32
    %329 = vector.broadcast %cst_135 : f32 to vector<8x128xf32>
    %330 = arith.addf %329, %328 : vector<8x128xf32>
    %331 = arith.divf %329, %330 : vector<8x128xf32>
    %332 = vector.extract_strided_slice %319 {offsets = [0, 256], sizes = [8, 128], strides = [1, 1]} : vector<8x512xf32> to vector<8x128xf32>
    %333 = math.tanh %332 : vector<8x128xf32>
    %334 = vector.extract_strided_slice %319 {offsets = [0, 384], sizes = [8, 128], strides = [1, 1]} : vector<8x512xf32> to vector<8x128xf32>
    %335 = arith.negf %334 : vector<8x128xf32>
    %336 = math.exp %335 : vector<8x128xf32>
    %cst_136 = arith.constant 1.000000e+00 : f32
    %337 = vector.broadcast %cst_136 : f32 to vector<8x128xf32>
    %338 = arith.addf %337, %336 : vector<8x128xf32>
    %339 = arith.divf %337, %338 : vector<8x128xf32>
    %340 = arith.mulf %331, %313 : vector<8x128xf32>
    %341 = arith.mulf %325, %333 : vector<8x128xf32>
    %342 = arith.addf %340, %341 : vector<8x128xf32>
    %343 = math.tanh %342 : vector<8x128xf32>
    %344 = arith.mulf %339, %343 : vector<8x128xf32>
    %c8_i32_137 = arith.constant 8 : i32
    %345 = arith.muli %arg0, %c8_i32_137 : i32
    %346 = arith.addi %345, %c7_i32 : i32
    %c8_i32_138 = arith.constant 8 : i32
    %347 = arith.cmpi slt, %346, %c8_i32_138 : i32
    %348 = arith.select %347, %344, %312 : vector<8x128xf32>
    %c0_139 = arith.constant 0 : index
    %c0_140 = arith.constant 0 : index
    %349 = vector.load %arg6[%c0_139, %c0_140] : memref<8x128xf32, #tpu.memory_space<vmem>>, vector<8x128xf32>
    tpu.vector_store %arg6[%c0_139, %c0_140], %348 {strides = array<i32>} : memref<8x128xf32, #tpu.memory_space<vmem>>, vector<8x128xf32>,
    %350 = arith.select %347, %342, %313 : vector<8x128xf32>
    %c0_141 = arith.constant 0 : index
    %c0_142 = arith.constant 0 : index
    %351 = vector.load %arg7[%c0_141, %c0_142] : memref<8x128xf32, #tpu.memory_space<vmem>>, vector<8x128xf32>
    tpu.vector_store %arg7[%c0_141, %c0_142], %350 {strides = array<i32>} : memref<8x128xf32, #tpu.memory_space<vmem>>, vector<8x128xf32>,
    %352 = arith.index_cast %c7_i32 : i32 to index
    %c0_143 = arith.constant 0 : index
    %c0_144 = arith.constant 0 : index
    %353 = vector.load %arg3[%352, %c0_143, %c0_144] : memref<8x8x128xf32, #tpu.memory_space<vmem>>, vector<1x8x128xf32>
    %354 = vector.shape_cast %353 : vector<1x8x128xf32> to vector<8x128xf32>
    %355 = vector.shape_cast %344 : vector<8x128xf32> to vector<1x8x128xf32>
    tpu.vector_store %arg3[%352, %c0_143, %c0_144], %355 {strides = array<i32>} : memref<8x8x128xf32, #tpu.memory_space<vmem>>, vector<1x8x128xf32>,
    %c8_i32_145 = arith.constant 8 : i32
    %c0_i32_146 = arith.constant 0 : i32
    %356 = arith.cmpi eq, %arg0, %c0_i32_146 : i32
    %357 = arith.extui %356 : i1 to i32
    %c0_i32_147 = arith.constant 0 : i32
    %358 = arith.cmpi ne, %357, %c0_i32_147 : i32
    scf.if %358 {
      %c0_148 = arith.constant 0 : index
      %c0_149 = arith.constant 0 : index
      %359 = vector.load %arg6[%c0_148, %c0_149] : memref<8x128xf32, #tpu.memory_space<vmem>>, vector<8x128xf32>
      %c0_150 = arith.constant 0 : index
      %c0_151 = arith.constant 0 : index
      %360 = vector.load %arg4[%c0_150, %c0_151] : memref<8x128xf32, #tpu.memory_space<vmem>>, vector<8x128xf32>
      tpu.vector_store %arg4[%c0_150, %c0_151], %359 {strides = array<i32>} : memref<8x128xf32, #tpu.memory_space<vmem>>, vector<8x128xf32>,
      %c0_152 = arith.constant 0 : index
      %c0_153 = arith.constant 0 : index
      %361 = vector.load %arg7[%c0_152, %c0_153] : memref<8x128xf32, #tpu.memory_space<vmem>>, vector<8x128xf32>
      %c0_154 = arith.constant 0 : index
      %c0_155 = arith.constant 0 : index
      %362 = vector.load %arg5[%c0_154, %c0_155] : memref<8x128xf32, #tpu.memory_space<vmem>>, vector<8x128xf32>
      tpu.vector_store %arg5[%c0_154, %c0_155], %361 {strides = array<i32>} : memref<8x128xf32, #tpu.memory_space<vmem>>, vector<8x128xf32>,
    } else {
    }
    return
  }
  func.func @transform_0(%arg0: i32) -> (i32, i32, i32) {
    %c0_i32 = arith.constant 0 : i32
    %c0_i32_0 = arith.constant 0 : i32
    %c0_i32_1 = arith.constant 0 : i32
    return %arg0, %c0_i32, %c0_i32_0 : i32, i32, i32
  }
  func.func @transform_1(%arg0: i32) -> (i32, i32) {
    %c0_i32 = arith.constant 0 : i32
    %c0_i32_0 = arith.constant 0 : i32
    %c0_i32_1 = arith.constant 0 : i32
    return %c0_i32, %c0_i32_0 : i32, i32
  }
  func.func @transform_2(%arg0: i32) -> (i32, i32, i32) {
    %c0_i32 = arith.constant 0 : i32
    %c0_i32_0 = arith.constant 0 : i32
    %c0_i32_1 = arith.constant 0 : i32
    return %arg0, %c0_i32, %c0_i32_0 : i32, i32, i32
  }
  func.func @transform_3(%arg0: i32) -> (i32, i32) {
    %c0_i32 = arith.constant 0 : i32
    %c0_i32_0 = arith.constant 0 : i32
    %c0_i32_1 = arith.constant 0 : i32
    return %c0_i32, %c0_i32_0 : i32, i32
  }
  func.func @transform_4(%arg0: i32) -> (i32, i32) {
    %c0_i32 = arith.constant 0 : i32
    %c0_i32_0 = arith.constant 0 : i32
    %c0_i32_1 = arith.constant 0 : i32
    return %c0_i32, %c0_i32_0 : i32, i32
  }
}

</mosaic_0001>

<llo_original>
// kernel: tpu_custom_call.1
$region0: #{tpu_custom_call.1}
  #allocation0 [shape = 'u32[]', space=smem, size = 0x4, offset = 0x4, fixed_abs, tag = 'smem constant byte address 0x4 - core index']
  #allocation1 [shape = 'u32[144,128]{1,0:T(1,128)}', space=vmem, size = 0x12000, scoped, tag = 'internal scratch']
  #allocation2 [shape = 'f32[8,128]{1,0:T(8,128)}', space=vmem, size = 0x1000, scoped, tag = 'scratch operand']
  #allocation3 [shape = 'f32[8,128]{1,0:T(8,128)}', space=vmem, size = 0x1000, scoped, tag = 'scratch operand']
  %s0 = inlined_call_operand.hbm [shape: f32[8,8,512], index: 0, kind: input, shape index: {}]
  %s1 = inlined_call_operand.hbm [shape: bf16[128,512], index: 1, kind: input, shape index: {}]
  %s2 = inlined_call_operand.hbm [shape: f32[8,8,128], index: 2, kind: output, shape index: {0}]
  %s3 = inlined_call_operand.hbm [shape: f32[8,128], index: 3, kind: output, shape index: {1}]
  %s4 = inlined_call_operand.hbm [shape: f32[8,128], index: 4, kind: output, shape index: {2}]
  %5 = xla_tuple %s2, %s3, %s4
  %s6 = sld [smem:[#allocation0]]
  $region50: #{tpu_custom_call.1} parent=0
    _
  %s8 = ssub.s32 1, %s6
  %s9 = scalar_select 0, %s8, %s6
  $region1: #{tpu_custom_call.1} parent=0
    #allocation4 [shape = 'u8[131072]{0}', space=vmem, size = 0x20000, scoped, tag = 'input window, operand 0, single buffered']
    #allocation5 [shape = 's32[1]{0}', space=sflag, size = 0x4, scoped, tag = 'scoped memory for tpu_custom_call.1']
    #allocation6 [shape = 's32[1]{0}', space=sflag, size = 0x4, scoped, tag = 'scoped memory for tpu_custom_call.1']
    #allocation7 [shape = 'u8[131072]{0}', space=vmem, size = 0x20000, scoped, tag = 'input window, operand 1, single buffered']
    #allocation8 [shape = 's32[1]{0}', space=sflag, size = 0x4, scoped, tag = 'scoped memory for tpu_custom_call.1']
    #allocation9 [shape = 'u8[32768]{0}', space=vmem, size = 0x8000, scoped, tag = 'output window, operand 0, single buffered']
    #allocation10 [shape = 'u8[4096]{0}', space=vmem, size = 0x1000, scoped, tag = 'output window, operand 1, single buffered']
    #allocation11 [shape = 's32[1]{0}', space=sflag, size = 0x4, scoped, tag = 'scoped memory for tpu_custom_call.1']
    #allocation12 [shape = 'u8[4096]{0}', space=vmem, size = 0x1000, scoped, tag = 'output window, operand 2, single buffered']
    %10 = vsyncpa [#allocation5], 0
    %11 = vsyncpa [#allocation8], 0
    %12 = vsyncpa [#allocation6], 0
    %13 = vsyncpa [#allocation11], 0
    // Predicated region
    $region2: #{tpu_custom_call.1} parent=1 // pred_check
      _
    $region3: #{tpu_custom_call.1} parent=1 // pred_check_branch
      %15 = sbr.rel (0) target = $region5
    $region4: #{tpu_custom_call.1} parent=1 // pred_region
      %s17 = ssub.s32 4096, 4096
      %18 = vsyncadd [#allocation5], %s17
      %s19 = sshll.u32 [#allocation4], 4
      %s20 = int_to_ptr.vmem [resolvable:$true] %s19
      %25 = dma.hbm_to_vmem [thread:$0]  %s0, 4096, %s20, [#allocation5], 512, 512, 32
    $region5: #{tpu_custom_call.1} parent=1 // pred_fallthru
      _
    // Predicated region
    $region6: #{tpu_custom_call.1} parent=1 // pred_check
      _
    $region7: #{tpu_custom_call.1} parent=1 // pred_check_branch
      %27 = sbr.rel (0) target = $region9
    $region8: #{tpu_custom_call.1} parent=1 // pred_region
      %s29 = ssub.s32 4096, 4096
      %30 = vsyncadd [#allocation8], %s29
      %s31 = sshll.u32 [#allocation7], 4
      %s32 = int_to_ptr.vmem [resolvable:$true] %s31
      %37 = dma.hbm_to_vmem [thread:$0]  %s1, 4096, %s32, [#allocation8], 256, 256, 16
    $region9: #{tpu_custom_call.1} parent=1 // pred_fallthru
      _
    // Predicated region
    $region10: #{tpu_custom_call.1} parent=1 // pred_check
      _
    $region11: #{tpu_custom_call.1} parent=1 // pred_check_branch
      %39 = sbr.rel (0) target = $region13
    $region12: #{tpu_custom_call.1} parent=1 // pred_region
      %40 = dma.done [#allocation5], 4096
    $region13: #{tpu_custom_call.1} parent=1 // pred_fallthru
      _
    // Predicated region
    $region14: #{tpu_custom_call.1} parent=1 // pred_check
      _
    $region15: #{tpu_custom_call.1} parent=1 // pred_check_branch
      %42 = sbr.rel (0) target = $region17
    $region16: #{tpu_custom_call.1} parent=1 // pred_region
      %43 = dma.done [#allocation8], 4096
    $region17: #{tpu_custom_call.1} parent=1 // pred_fallthru
      _
    %p45 = scmp.eq.s32.totalorder 0, 0
    // Predicated region
    $region18: #{tpu_custom_call.1} parent=1 // pred_check
      %p46 = pneg %p45
    $region19: #{tpu_custom_call.1} parent=1 // pred_check_branch
      %48 = sbr.rel (%p46) target = $region21
    $region20: #{tpu_custom_call.1} parent=1 // pred_region
      %49 = vst [vmem:[#allocation2] sm:$0xff] 0.0
      %50 = vst [vmem:[#allocation3] sm:$0xff] 0.0
    $region21: #{tpu_custom_call.1} parent=1 // pred_fallthru
      _
    %v51 = vld [vmem:[#allocation7] sm:$0xff]
    %v52 = vld [vmem:[#allocation7 + $0x8] sm:$0xff]
    %v53 = vld [vmem:[#allocation7 + $0x10] sm:$0xff]
    %v54 = vld [vmem:[#allocation7 + $0x18] sm:$0xff]
    %v55 = vld [vmem:[#allocation7 + $0x20] sm:$0xff]
    %v56 = vld [vmem:[#allocation7 + $0x28] sm:$0xff]
    %v57 = vld [vmem:[#allocation7 + $0x30] sm:$0xff]
    %v58 = vld [vmem:[#allocation7 + $0x38] sm:$0xff]
    %v59 = vld [vmem:[#allocation7 + $0x40] sm:$0xff]
    %v60 = vld [vmem:[#allocation7 + $0x48] sm:$0xff]
    %v61 = vld [vmem:[#allocation7 + $0x50] sm:$0xff]
    %v62 = vld [vmem:[#allocation7 + $0x58] sm:$0xff]
    %v63 = vld [vmem:[#allocation7 + $0x60] sm:$0xff]
    %v64 = vld [vmem:[#allocation7 + $0x68] sm:$0xff]
    %v65 = vld [vmem:[#allocation7 + $0x70] sm:$0xff]
    %v66 = vld [vmem:[#allocation7 + $0x78] sm:$0xff]
    %v67 = vld [vmem:[#allocation7 + $0x80] sm:$0xff]
    %v68 = vld [vmem:[#allocation7 + $0x88] sm:$0xff]
    %v69 = vld [vmem:[#allocation7 + $0x90] sm:$0xff]
    %v70 = vld [vmem:[#allocation7 + $0x98] sm:$0xff]
    %v71 = vld [vmem:[#allocation7 + $0xa0] sm:$0xff]
    %v72 = vld [vmem:[#allocation7 + $0xa8] sm:$0xff]
    %v73 = vld [vmem:[#allocation7 + $0xb0] sm:$0xff]
    %v74 = vld [vmem:[#allocation7 + $0xb8] sm:$0xff]
    %v75 = vld [vmem:[#allocation7 + $0xc0] sm:$0xff]
    %v76 = vld [vmem:[#allocation7 + $0xc8] sm:$0xff]
    %v77 = vld [vmem:[#allocation7 + $0xd0] sm:$0xff]
    %v78 = vld [vmem:[#allocation7 + $0xd8] sm:$0xff]
    %v79 = vld [vmem:[#allocation7 + $0xe0] sm:$0xff]
    %v80 = vld [vmem:[#allocation7 + $0xe8] sm:$0xff]
    %v81 = vld [vmem:[#allocation7 + $0xf0] sm:$0xff]
    %v82 = vld [vmem:[#allocation7 + $0xf8] sm:$0xff]
    %v83 = vld [vmem:[#allocation2] sm:$0xff]
    %v84 = vld [vmem:[#allocation3] sm:$0xff]
    %v85 = vld [vmem:[#allocation4] sm:$0xff]
    %v86 = vld [vmem:[#allocation4 + $0x8] sm:$0xff]
    %v87 = vld [vmem:[#allocation4 + $0x10] sm:$0xff]
    %v88 = vld [vmem:[#allocation4 + $0x18] sm:$0xff]
    %v89 = vpack.c.bf16 %v83, %v83
    %v122 = vunpack.c.l.b16 %v51
    %v123 = vunpack.c.h.b16 %v51
    %v124 = vunpack.c.l.b16 %v52
    %v125 = vunpack.c.h.b16 %v52
    %v126 = vunpack.c.l.b16 %v53
    %v127 = vunpack.c.h.b16 %v53
    %v128 = vunpack.c.l.b16 %v54
    %v129 = vunpack.c.h.b16 %v54
    %v130 = vunpack.c.l.b16 %v55
    %v131 = vunpack.c.h.b16 %v55
    %v132 = vunpack.c.l.b16 %v56
    %v133 = vunpack.c.h.b16 %v56
    %v134 = vunpack.c.l.b16 %v57
    %v135 = vunpack.c.h.b16 %v57
    %v136 = vunpack.c.l.b16 %v58
    %v137 = vunpack.c.h.b16 %v58
    %v138 = vunpack.c.l.b16 %v59
    %v139 = vunpack.c.h.b16 %v59
    %v140 = vunpack.c.l.b16 %v60
    %v141 = vunpack.c.h.b16 %v60
    %v142 = vunpack.c.l.b16 %v61
    %v143 = vunpack.c.h.b16 %v61
    %v144 = vunpack.c.l.b16 %v62
    %v145 = vunpack.c.h.b16 %v62
    %v146 = vunpack.c.l.b16 %v63
    %v147 = vunpack.c.h.b16 %v63
    %v148 = vunpack.c.l.b16 %v64
    %v149 = vunpack.c.h.b16 %v64
    %v150 = vunpack.c.l.b16 %v65
    %v151 = vunpack.c.h.b16 %v65
    %v152 = vunpack.c.l.b16 %v66
    %v153 = vunpack.c.h.b16 %v66
    %v154 = vunpack.c.l.b16 %v67
    %v155 = vunpack.c.h.b16 %v67
    %v156 = vunpack.c.l.b16 %v68
    %v157 = vunpack.c.h.b16 %v68
    %v158 = vunpack.c.l.b16 %v69
    %v159 = vunpack.c.h.b16 %v69
    %v160 = vunpack.c.l.b16 %v70
    %v161 = vunpack.c.h.b16 %v70
    %v162 = vunpack.c.l.b16 %v71
    %v163 = vunpack.c.h.b16 %v71
    %v164 = vunpack.c.l.b16 %v72
    %v165 = vunpack.c.h.b16 %v72
    %v166 = vunpack.c.l.b16 %v73
    %v167 = vunpack.c.h.b16 %v73
    %v168 = vunpack.c.l.b16 %v74
    %v169 = vunpack.c.h.b16 %v74
    %v170 = vunpack.c.l.b16 %v75
    %v171 = vunpack.c.h.b16 %v75
    %v172 = vunpack.c.l.b16 %v76
    %v173 = vunpack.c.h.b16 %v76
    %v174 = vunpack.c.l.b16 %v77
    %v175 = vunpack.c.h.b16 %v77
    %v176 = vunpack.c.l.b16 %v78
    %v177 = vunpack.c.h.b16 %v78
    %v178 = vunpack.c.l.b16 %v79
    %v179 = vunpack.c.h.b16 %v79
    %v180 = vunpack.c.l.b16 %v80
    %v181 = vunpack.c.h.b16 %v80
    %v182 = vunpack.c.l.b16 %v81
    %v183 = vunpack.c.h.b16 %v81
    %v184 = vunpack.c.l.b16 %v82
    %v185 = vunpack.c.h.b16 %v82
    %v186 = vpack.c.b16 %v126, %v122
    %v187 = vpack.c.b16 %v127, %v123
    %v188 = vpack.c.b16 %v128, %v124
    %v189 = vpack.c.b16 %v129, %v125
    %v190 = vpack.c.b16 %v134, %v130
    %v191 = vpack.c.b16 %v135, %v131
    %v192 = vpack.c.b16 %v136, %v132
    %v193 = vpack.c.b16 %v137, %v133
    %v194 = vpack.c.b16 %v142, %v138
    %v195 = vpack.c.b16 %v143, %v139
    %v196 = vpack.c.b16 %v144, %v140
    %v197 = vpack.c.b16 %v145, %v141
    %v198 = vpack.c.b16 %v150, %v146
    %v199 = vpack.c.b16 %v151, %v147
    %v200 = vpack.c.b16 %v152, %v148
    %v201 = vpack.c.b16 %v153, %v149
    %v202 = vpack.c.b16 %v158, %v154
    %v203 = vpack.c.b16 %v159, %v155
    %v204 = vpack.c.b16 %v160, %v156
    %v205 = vpack.c.b16 %v161, %v157
    %v206 = vpack.c.b16 %v166, %v162
    %v207 = vpack.c.b16 %v167, %v163
    %v208 = vpack.c.b16 %v168, %v164
    %v209 = vpack.c.b16 %v169, %v165
    %v210 = vpack.c.b16 %v174, %v170
    %v211 = vpack.c.b16 %v175, %v171
    %v212 = vpack.c.b16 %v176, %v172
    %v213 = vpack.c.b16 %v177, %v173
    %v214 = vpack.c.b16 %v182, %v178
    %v215 = vpack.c.b16 %v183, %v179
    %v216 = vpack.c.b16 %v184, %v180
    %v217 = vpack.c.b16 %v185, %v181
    %250 = vmatprep.subr.bf16.mxu0 %v215
    %251 = vmatpush1.bf16.msra.mxu0 %v214
    %252 = vmatprep.subr.bf16.mxu0 %v211
    %253 = vmatpush1.bf16.msra.mxu0 %v210
    %254 = vmatprep.subr.bf16.mxu0 %v207
    %255 = vmatpush1.bf16.msra.mxu0 %v206
    %256 = vmatprep.subr.bf16.mxu0 %v203
    %257 = vmatpush1.bf16.msra.mxu0 %v202
    %258 = vmatprep.subr.bf16.mxu0 %v199
    %259 = vmatpush1.bf16.msra.mxu0 %v198
    %260 = vmatprep.subr.bf16.mxu0 %v195
    %261 = vmatpush1.bf16.msra.mxu0 %v194
    %262 = vmatprep.subr.bf16.mxu0 %v191
    %263 = vmatpush1.bf16.msra.mxu0 %v190
    %264 = vmatprep.subr.bf16.mxu0 %v187
    %265 = vmatpush1.bf16.msra.mxu0 %v186
    %266 = vmatprep.subr.bf16.mxu0 0
    %267 = vmatpush2.bf16.msra.mxu0 0
    %268 = vmatprep.subr.bf16.mxu0 0
    %269 = vmatpush2.bf16.msra.mxu0 0
    %270 = vmatprep.subr.bf16.mxu0 0
    %271 = vmatpush2.bf16.msra.mxu0 0
    %272 = vmatprep.subr.bf16.mxu0 0
    %273 = vmatpush2.bf16.msra.mxu0 0
    %274 = vmatprep.subr.bf16.mxu0 0
    %275 = vmatpush2.bf16.msra.mxu0 0
    %276 = vmatprep.subr.bf16.mxu0 0
    %277 = vmatpush2.bf16.msra.mxu0 0
    %278 = vmatprep.subr.bf16.mxu0 0
    %279 = vmatpush2.bf16.msra.mxu0 0
    %280 = vmatprep.subr.bf16.mxu0 0
    %281 = vmatpush2.bf16.msra.mxu0 0
    %282 = vmatprep.mubr.bf16.mxu0 0
    %283 = vmatmul.mubr.bf16.gmra.mxu0 %v89
    %v284 = vpop.f32.mrf.mxu0
    %v285 = vadd.f32 0.0, %v284
    %v286 = vpop.f32.mrf.mxu0
    %v287 = vadd.f32 0.0, %v286
    %v288 = vpop.f32.mrf.mxu0
    %v289 = vpop.f32.mrf.mxu0
    %290 = vdwg.mxu0
    %291 = vmatprep.subr.bf16.mxu0 %v217
    %292 = vmatpush1.bf16.msra.mxu0 %v216
    %293 = vmatprep.subr.bf16.mxu0 %v213
    %294 = vmatpush1.bf16.msra.mxu0 %v212
    %295 = vmatprep.subr.bf16.mxu0 %v209
    %296 = vmatpush1.bf16.msra.mxu0 %v208
    %297 = vmatprep.subr.bf16.mxu0 %v205
    %298 = vmatpush1.bf16.msra.mxu0 %v204
    %299 = vmatprep.subr.bf16.mxu0 %v201
    %300 = vmatpush1.bf16.msra.mxu0 %v200
    %301 = vmatprep.subr.bf16.mxu0 %v197
    %302 = vmatpush1.bf16.msra.mxu0 %v196
    %303 = vmatprep.subr.bf16.mxu0 %v193
    %304 = vmatpush1.bf16.msra.mxu0 %v192
    %305 = vmatprep.subr.bf16.mxu0 %v189
    %306 = vmatpush1.bf16.msra.mxu0 %v188
    %307 = vmatprep.subr.bf16.mxu0 0
    %308 = vmatpush2.bf16.msra.mxu0 0
    %309 = vmatprep.subr.bf16.mxu0 0
    %310 = vmatpush2.bf16.msra.mxu0 0
    %311 = vmatprep.subr.bf16.mxu0 0
    %312 = vmatpush2.bf16.msra.mxu0 0
    %313 = vmatprep.subr.bf16.mxu0 0
    %314 = vmatpush2.bf16.msra.mxu0 0
    %315 = vmatprep.subr.bf16.mxu0 0
    %316 = vmatpush2.bf16.msra.mxu0 0
    %317 = vmatprep.subr.bf16.mxu0 0
    %318 = vmatpush2.bf16.msra.mxu0 0
    %319 = vmatprep.subr.bf16.mxu0 0
    %320 = vmatpush2.bf16.msra.mxu0 0
    %321 = vmatprep.subr.bf16.mxu0 0
    %322 = vmatpush2.bf16.msra.mxu0 0
    %323 = vmatprep.mubr.bf16.mxu0 0
    %324 = vmatmul.mubr.bf16.gmra.mxu0 %v89
    %v325 = vpop.f32.mrf.mxu0
    %v326 = vadd.f32 0.0, %v325
    %v327 = vpop.f32.mrf.mxu0
    %v328 = vadd.f32 0.0, %v327
    %v329 = vpop.f32.mrf.mxu0
    %v330 = vpop.f32.mrf.mxu0
    %331 = vdwg.mxu0
    %v332 = vadd.f32 %v85, %v285
    %v333 = vadd.f32 %v86, %v287
    %v334 = vadd.f32 %v87, %v326
    %v335 = vadd.f32 %v88, %v328
    %v336 = vxor.u32 %v332, 2147483648
    %v337 = vmul.f32 %v336, 1.442695
    %v338 = vpow.pop %v337
    %v339 = vadd.f32 %v338, 1.0
    %v340 = vrcp.pop %v339
    %v341 = vmul.f32 1.0, %v340
    %v342 = vxor.u32 %v333, 2147483648
    %v343 = vmul.f32 %v342, 1.442695
    %v344 = vpow.pop %v343
    %v345 = vadd.f32 %v344, 1.0
    %v346 = vrcp.pop %v345
    %v347 = vmul.f32 1.0, %v346
    %v348 = vtanh.pop %v334
    %v349 = vxor.u32 %v335, 2147483648
    %v350 = vmul.f32 %v349, 1.442695
    %v351 = vpow.pop %v350
    %v352 = vadd.f32 %v351, 1.0
    %v353 = vrcp.pop %v352
    %v354 = vmul.f32 1.0, %v353
    %v355 = vmul.f32 %v347, %v84
    %v356 = vmul.f32 %v341, %v348
    %v357 = vadd.f32 %v355, %v356
    %v358 = vtanh.pop %v357
    %v359 = vmul.f32 %v354, %v358
    %s360 = smul.u32 0, 8
    %p361 = scmp.lt.s32.totalorder %s360, 8
    %s362 = scalar_select %p361, 1, 0
    %v363 = vstv %s362
    %vm364 = vcmp.eq.s32.totalorder %v363, 1
    %v365 = vsel %vm364, %v359, %v83
    %366 = vst [vmem:[#allocation2] sm:$0xff] %v365
    %v367 = vsel %vm364, %v357, %v84
    %368 = vst [vmem:[#allocation3] sm:$0xff] %v367
    %369 = vst [vmem:[#allocation9] sm:$0xff] %v359
    %v370 = vld [vmem:[#allocation2] sm:$0xff]
    %v371 = vld [vmem:[#allocation3] sm:$0xff]
    %s372 = scalar_lea.vmem [#allocation4], 32
    %v373 = vld [vmem:[%s372] sm:$0xff]
    %v374 = vld [vmem:[%s372 + $0x8] sm:$0xff]
    %v375 = vld [vmem:[%s372 + $0x10] sm:$0xff]
    %v376 = vld [vmem:[%s372 + $0x18] sm:$0xff]
    %v377 = vpack.c.bf16 %v370, %v370
    %378 = vmatprep.subr.bf16.mxu0 %v215
    %379 = vmatpush1.bf16.msra.mxu0 %v214
    %380 = vmatprep.subr.bf16.mxu0 %v211
    %381 = vmatpush1.bf16.msra.mxu0 %v210
    %382 = vmatprep.subr.bf16.mxu0 %v207
    %383 = vmatpush1.bf16.msra.mxu0 %v206
    %384 = vmatprep.subr.bf16.mxu0 %v203
    %385 = vmatpush1.bf16.msra.mxu0 %v202
    %386 = vmatprep.subr.bf16.mxu0 %v199
    %387 = vmatpush1.bf16.msra.mxu0 %v198
    %388 = vmatprep.subr.bf16.mxu0 %v195
    %389 = vmatpush1.bf16.msra.mxu0 %v194
    %390 = vmatprep.subr.bf16.mxu0 %v191
    %391 = vmatpush1.bf16.msra.mxu0 %v190
    %392 = vmatprep.subr.bf16.mxu0 %v187
    %393 = vmatpush1.bf16.msra.mxu0 %v186
    %394 = vmatprep.subr.bf16.mxu0 0
    %395 = vmatpush2.bf16.msra.mxu0 0
    %396 = vmatprep.subr.bf16.mxu0 0
    %397 = vmatpush2.bf16.msra.mxu0 0
    %398 = vmatprep.subr.bf16.mxu0 0
    %399 = vmatpush2.bf16.msra.mxu0 0
    %400 = vmatprep.subr.bf16.mxu0 0
    %401 = vmatpush2.bf16.msra.mxu0 0
    %402 = vmatprep.subr.bf16.mxu0 0
    %403 = vmatpush2.bf16.msra.mxu0 0
    %404 = vmatprep.subr.bf16.mxu0 0
    %405 = vmatpush2.bf16.msra.mxu0 0
    %406 = vmatprep.subr.bf16.mxu0 0
    %407 = vmatpush2.bf16.msra.mxu0 0
    %408 = vmatprep.subr.bf16.mxu0 0
    %409 = vmatpush2.bf16.msra.mxu0 0
    %410 = vmatprep.mubr.bf16.mxu0 0
    %411 = vmatmul.mubr.bf16.gmra.mxu0 %v377
    %v412 = vpop.f32.mrf.mxu0
    %v413 = vadd.f32 0.0, %v412
    %v414 = vpop.f32.mrf.mxu0
    %v415 = vadd.f32 0.0, %v414
    %v416 = vpop.f32.mrf.mxu0
    %v417 = vpop.f32.mrf.mxu0
    %418 = vdwg.mxu0
    %419 = vmatprep.subr.bf16.mxu0 %v217
    %420 = vmatpush1.bf16.msra.mxu0 %v216
    %421 = vmatprep.subr.bf16.mxu0 %v213
    %422 = vmatpush1.bf16.msra.mxu0 %v212
    %423 = vmatprep.subr.bf16.mxu0 %v209
    %424 = vmatpush1.bf16.msra.mxu0 %v208
    %425 = vmatprep.subr.bf16.mxu0 %v205
    %426 = vmatpush1.bf16.msra.mxu0 %v204
    %427 = vmatprep.subr.bf16.mxu0 %v201
    %428 = vmatpush1.bf16.msra.mxu0 %v200
    %429 = vmatprep.subr.bf16.mxu0 %v197
    %430 = vmatpush1.bf16.msra.mxu0 %v196
    %431 = vmatprep.subr.bf16.mxu0 %v193
    %432 = vmatpush1.bf16.msra.mxu0 %v192
    %433 = vmatprep.subr.bf16.mxu0 %v189
    %434 = vmatpush1.bf16.msra.mxu0 %v188
    %435 = vmatprep.subr.bf16.mxu0 0
    %436 = vmatpush2.bf16.msra.mxu0 0
    %437 = vmatprep.subr.bf16.mxu0 0
    %438 = vmatpush2.bf16.msra.mxu0 0
    %439 = vmatprep.subr.bf16.mxu0 0
    %440 = vmatpush2.bf16.msra.mxu0 0
    %441 = vmatprep.subr.bf16.mxu0 0
    %442 = vmatpush2.bf16.msra.mxu0 0
    %443 = vmatprep.subr.bf16.mxu0 0
    %444 = vmatpush2.bf16.msra.mxu0 0
    %445 = vmatprep.subr.bf16.mxu0 0
    %446 = vmatpush2.bf16.msra.mxu0 0
    %447 = vmatprep.subr.bf16.mxu0 0
    %448 = vmatpush2.bf16.msra.mxu0 0
    %449 = vmatprep.subr.bf16.mxu0 0
    %450 = vmatpush2.bf16.msra.mxu0 0
    %451 = vmatprep.mubr.bf16.mxu0 0
    %452 = vmatmul.mubr.bf16.gmra.mxu0 %v377
    %v453 = vpop.f32.mrf.mxu0
    %v454 = vadd.f32 0.0, %v453
    %v455 = vpop.f32.mrf.mxu0
    %v456 = vadd.f32 0.0, %v455
    %v457 = vpop.f32.mrf.mxu0
    %v458 = vpop.f32.mrf.mxu0
    %459 = vdwg.mxu0
    %v460 = vadd.f32 %v373, %v413
    %v461 = vadd.f32 %v374, %v415
    %v462 = vadd.f32 %v375, %v454
    %v463 = vadd.f32 %v376, %v456
    %v464 = vxor.u32 %v460, 2147483648
    %v465 = vmul.f32 %v464, 1.442695
    %v466 = vpow.pop %v465
    %v467 = vadd.f32 %v466, 1.0
    %v468 = vrcp.pop %v467
    %v469 = vmul.f32 1.0, %v468
    %v470 = vxor.u32 %v461, 2147483648
    %v471 = vmul.f32 %v470, 1.442695
    %v472 = vpow.pop %v471
    %v473 = vadd.f32 %v472, 1.0
    %v474 = vrcp.pop %v473
    %v475 = vmul.f32 1.0, %v474
    %v476 = vtanh.pop %v462
    %v477 = vxor.u32 %v463, 2147483648
    %v478 = vmul.f32 %v477, 1.442695
    %v479 = vpow.pop %v478
    %v480 = vadd.f32 %v479, 1.0
    %v481 = vrcp.pop %v480
    %v482 = vmul.f32 1.0, %v481
    %v483 = vmul.f32 %v475, %v371
    %v484 = vmul.f32 %v469, %v476
    %v485 = vadd.f32 %v483, %v484
    %v486 = vtanh.pop %v485
    %v487 = vmul.f32 %v482, %v486
    %s488 = sadd.s32 %s360, 1
    %p489 = scmp.lt.s32.totalorder %s488, 8
    %s490 = scalar_select %p489, 1, 0
    %v491 = vstv %s490
    %vm492 = vcmp.eq.s32.totalorder %v491, 1
    %v493 = vsel %vm492, %v487, %v370
    %494 = vst [vmem:[#allocation2] sm:$0xff] %v493
    %v495 = vsel %vm492, %v485, %v371
    %496 = vst [vmem:[#allocation3] sm:$0xff] %v495
    %s497 = scalar_lea.vmem [#allocation9], 8
    %498 = vst [vmem:[%s497] sm:$0xff] %v487
    %v499 = vld [vmem:[#allocation2] sm:$0xff]
    %v500 = vld [vmem:[#allocation3] sm:$0xff]
    %s501 = scalar_lea.vmem [#allocation4], 64
    %v502 = vld [vmem:[%s501] sm:$0xff]
    %v503 = vld [vmem:[%s501 + $0x8] sm:$0xff]
    %v504 = vld [vmem:[%s501 + $0x10] sm:$0xff]
    %v505 = vld [vmem:[%s501 + $0x18] sm:$0xff]
    %v506 = vpack.c.bf16 %v499, %v499
    %507 = vmatprep.subr.bf16.mxu0 %v215
    %508 = vmatpush1.bf16.msra.mxu0 %v214
    %509 = vmatprep.subr.bf16.mxu0 %v211
    %510 = vmatpush1.bf16.msra.mxu0 %v210
    %511 = vmatprep.subr.bf16.mxu0 %v207
    %512 = vmatpush1.bf16.msra.mxu0 %v206
    %513 = vmatprep.subr.bf16.mxu0 %v203
    %514 = vmatpush1.bf16.msra.mxu0 %v202
    %515 = vmatprep.subr.bf16.mxu0 %v199
    %516 = vmatpush1.bf16.msra.mxu0 %v198
    %517 = vmatprep.subr.bf16.mxu0 %v195
    %518 = vmatpush1.bf16.msra.mxu0 %v194
    %519 = vmatprep.subr.bf16.mxu0 %v191
    %520 = vmatpush1.bf16.msra.mxu0 %v190
    %521 = vmatprep.subr.bf16.mxu0 %v187
    %522 = vmatpush1.bf16.msra.mxu0 %v186
    %523 = vmatprep.subr.bf16.mxu0 0
    %524 = vmatpush2.bf16.msra.mxu0 0
    %525 = vmatprep.subr.bf16.mxu0 0
    %526 = vmatpush2.bf16.msra.mxu0 0
    %527 = vmatprep.subr.bf16.mxu0 0
    %528 = vmatpush2.bf16.msra.mxu0 0
    %529 = vmatprep.subr.bf16.mxu0 0
    %530 = vmatpush2.bf16.msra.mxu0 0
    %531 = vmatprep.subr.bf16.mxu0 0
    %532 = vmatpush2.bf16.msra.mxu0 0
    %533 = vmatprep.subr.bf16.mxu0 0
    %534 = vmatpush2.bf16.msra.mxu0 0
    %535 = vmatprep.subr.bf16.mxu0 0
    %536 = vmatpush2.bf16.msra.mxu0 0
    %537 = vmatprep.subr.bf16.mxu0 0
    %538 = vmatpush2.bf16.msra.mxu0 0
    %539 = vmatprep.mubr.bf16.mxu0 0
    %540 = vmatmul.mubr.bf16.gmra.mxu0 %v506
    %v541 = vpop.f32.mrf.mxu0
    %v542 = vadd.f32 0.0, %v541
    %v543 = vpop.f32.mrf.mxu0
    %v544 = vadd.f32 0.0, %v543
    %v545 = vpop.f32.mrf.mxu0
    %v546 = vpop.f32.mrf.mxu0
    %547 = vdwg.mxu0
    %548 = vmatprep.subr.bf16.mxu0 %v217
    %549 = vmatpush1.bf16.msra.mxu0 %v216
    %550 = vmatprep.subr.bf16.mxu0 %v213
    %551 = vmatpush1.bf16.msra.mxu0 %v212
    %552 = vmatprep.subr.bf16.mxu0 %v209
    %553 = vmatpush1.bf16.msra.mxu0 %v208
    %554 = vmatprep.subr.bf16.mxu0 %v205
    %555 = vmatpush1.bf16.msra.mxu0 %v204
    %556 = vmatprep.subr.bf16.mxu0 %v201
    %557 = vmatpush1.bf16.msra.mxu0 %v200
    %558 = vmatprep.subr.bf16.mxu0 %v197
    %559 = vmatpush1.bf16.msra.mxu0 %v196
    %560 = vmatprep.subr.bf16.mxu0 %v193
    %561 = vmatpush1.bf16.msra.mxu0 %v192
    %562 = vmatprep.subr.bf16.mxu0 %v189
    %563 = vmatpush1.bf16.msra.mxu0 %v188
    %564 = vmatprep.subr.bf16.mxu0 0
    %565 = vmatpush2.bf16.msra.mxu0 0
    %566 = vmatprep.subr.bf16.mxu0 0
    %567 = vmatpush2.bf16.msra.mxu0 0
    %568 = vmatprep.subr.bf16.mxu0 0
    %569 = vmatpush2.bf16.msra.mxu0 0
    %570 = vmatprep.subr.bf16.mxu0 0
    %571 = vmatpush2.bf16.msra.mxu0 0
    %572 = vmatprep.subr.bf16.mxu0 0
    %573 = vmatpush2.bf16.msra.mxu0 0
    %574 = vmatprep.subr.bf16.mxu0 0
    %575 = vmatpush2.bf16.msra.mxu0 0
    %576 = vmatprep.subr.bf16.mxu0 0
    %577 = vmatpush2.bf16.msra.mxu0 0
    %578 = vmatprep.subr.bf16.mxu0 0
    %579 = vmatpush2.bf16.msra.mxu0 0
    %580 = vmatprep.mubr.bf16.mxu0 0
    %581 = vmatmul.mubr.bf16.gmra.mxu0 %v506
    %v582 = vpop.f32.mrf.mxu0
    %v583 = vadd.f32 0.0, %v582
    %v584 = vpop.f32.mrf.mxu0
    %v585 = vadd.f32 0.0, %v584
    %v586 = vpop.f32.mrf.mxu0
    %v587 = vpop.f32.mrf.mxu0
    %588 = vdwg.mxu0
    %v589 = vadd.f32 %v502, %v542
    %v590 = vadd.f32 %v503, %v544
    %v591 = vadd.f32 %v504, %v583
    %v592 = vadd.f32 %v505, %v585
    %v593 = vxor.u32 %v589, 2147483648
    %v594 = vmul.f32 %v593, 1.442695
    %v595 = vpow.pop %v594
    %v596 = vadd.f32 %v595, 1.0
    %v597 = vrcp.pop %v596
    %v598 = vmul.f32 1.0, %v597
    %v599 = vxor.u32 %v590, 2147483648
    %v600 = vmul.f32 %v599, 1.442695
    %v601 = vpow.pop %v600
    %v602 = vadd.f32 %v601, 1.0
    %v603 = vrcp.pop %v602
    %v604 = vmul.f32 1.0, %v603
    %v605 = vtanh.pop %v591
    %v606 = vxor.u32 %v592, 2147483648
    %v607 = vmul.f32 %v606, 1.442695
    %v608 = vpow.pop %v607
    %v609 = vadd.f32 %v608, 1.0
    %v610 = vrcp.pop %v609
    %v611 = vmul.f32 1.0, %v610
    %v612 = vmul.f32 %v604, %v500
    %v613 = vmul.f32 %v598, %v605
    %v614 = vadd.f32 %v612, %v613
    %v615 = vtanh.pop %v614
    %v616 = vmul.f32 %v611, %v615
    %s617 = sadd.s32 %s360, 2
    %p618 = scmp.lt.s32.totalorder %s617, 8
    %s619 = scalar_select %p618, 1, 0
    %v620 = vstv %s619
    %vm621 = vcmp.eq.s32.totalorder %v620, 1
    %v622 = vsel %vm621, %v616, %v499
    %623 = vst [vmem:[#allocation2] sm:$0xff] %v622
    %v624 = vsel %vm621, %v614, %v500
    %625 = vst [vmem:[#allocation3] sm:$0xff] %v624
    %s626 = scalar_lea.vmem [#allocation9], 16
    %627 = vst [vmem:[%s626] sm:$0xff] %v616
    %v628 = vld [vmem:[#allocation2] sm:$0xff]
    %v629 = vld [vmem:[#allocation3] sm:$0xff]
    %s630 = scalar_lea.vmem [#allocation4], 96
    %v631 = vld [vmem:[%s630] sm:$0xff]
    %v632 = vld [vmem:[%s630 + $0x8] sm:$0xff]
    %v633 = vld [vmem:[%s630 + $0x10] sm:$0xff]
    %v634 = vld [vmem:[%s630 + $0x18] sm:$0xff]
    %v635 = vpack.c.bf16 %v628, %v628
    %636 = vmatprep.subr.bf16.mxu0 %v215
    %637 = vmatpush1.bf16.msra.mxu0 %v214
    %638 = vmatprep.subr.bf16.mxu0 %v211
    %639 = vmatpush1.bf16.msra.mxu0 %v210
    %640 = vmatprep.subr.bf16.mxu0 %v207
    %641 = vmatpush1.bf16.msra.mxu0 %v206
    %642 = vmatprep.subr.bf16.mxu0 %v203
    %643 = vmatpush1.bf16.msra.mxu0 %v202
    %644 = vmatprep.subr.bf16.mxu0 %v199
    %645 = vmatpush1.bf16.msra.mxu0 %v198
    %646 = vmatprep.subr.bf16.mxu0 %v195
    %647 = vmatpush1.bf16.msra.mxu0 %v194
    %648 = vmatprep.subr.bf16.mxu0 %v191
    %649 = vmatpush1.bf16.msra.mxu0 %v190
    %650 = vmatprep.subr.bf16.mxu0 %v187
    %651 = vmatpush1.bf16.msra.mxu0 %v186
    %652 = vmatprep.subr.bf16.mxu0 0
    %653 = vmatpush2.bf16.msra.mxu0 0
    %654 = vmatprep.subr.bf16.mxu0 0
    %655 = vmatpush2.bf16.msra.mxu0 0
    %656 = vmatprep.subr.bf16.mxu0 0
    %657 = vmatpush2.bf16.msra.mxu0 0
    %658 = vmatprep.subr.bf16.mxu0 0
    %659 = vmatpush2.bf16.msra.mxu0 0
    %660 = vmatprep.subr.bf16.mxu0 0
    %661 = vmatpush2.bf16.msra.mxu0 0
    %662 = vmatprep.subr.bf16.mxu0 0
    %663 = vmatpush2.bf16.msra.mxu0 0
    %664 = vmatprep.subr.bf16.mxu0 0
    %665 = vmatpush2.bf16.msra.mxu0 0
    %666 = vmatprep.subr.bf16.mxu0 0
    %667 = vmatpush2.bf16.msra.mxu0 0
    %668 = vmatprep.mubr.bf16.mxu0 0
    %669 = vmatmul.mubr.bf16.gmra.mxu0 %v635
    %v670 = vpop.f32.mrf.mxu0
    %v671 = vadd.f32 0.0, %v670
    %v672 = vpop.f32.mrf.mxu0
    %v673 = vadd.f32 0.0, %v672
    %v674 = vpop.f32.mrf.mxu0
    %v675 = vpop.f32.mrf.mxu0
    %676 = vdwg.mxu0
    %677 = vmatprep.subr.bf16.mxu0 %v217
    %678 = vmatpush1.bf16.msra.mxu0 %v216
    %679 = vmatprep.subr.bf16.mxu0 %v213
    %680 = vmatpush1.bf16.msra.mxu0 %v212
    %681 = vmatprep.subr.bf16.mxu0 %v209
    %682 = vmatpush1.bf16.msra.mxu0 %v208
    %683 = vmatprep.subr.bf16.mxu0 %v205
    %684 = vmatpush1.bf16.msra.mxu0 %v204
    %685 = vmatprep.subr.bf16.mxu0 %v201
    %686 = vmatpush1.bf16.msra.mxu0 %v200
    %687 = vmatprep.subr.bf16.mxu0 %v197
    %688 = vmatpush1.bf16.msra.mxu0 %v196
    %689 = vmatprep.subr.bf16.mxu0 %v193
    %690 = vmatpush1.bf16.msra.mxu0 %v192
    %691 = vmatprep.subr.bf16.mxu0 %v189
    %692 = vmatpush1.bf16.msra.mxu0 %v188
    %693 = vmatprep.subr.bf16.mxu0 0
    %694 = vmatpush2.bf16.msra.mxu0 0
    %695 = vmatprep.subr.bf16.mxu0 0
    %696 = vmatpush2.bf16.msra.mxu0 0
    %697 = vmatprep.subr.bf16.mxu0 0
    %698 = vmatpush2.bf16.msra.mxu0 0
    %699 = vmatprep.subr.bf16.mxu0 0
    %700 = vmatpush2.bf16.msra.mxu0 0
    %701 = vmatprep.subr.bf16.mxu0 0
    %702 = vmatpush2.bf16.msra.mxu0 0
    %703 = vmatprep.subr.bf16.mxu0 0
    %704 = vmatpush2.bf16.msra.mxu0 0
    %705 = vmatprep.subr.bf16.mxu0 0
    %706 = vmatpush2.bf16.msra.mxu0 0
    %707 = vmatprep.subr.bf16.mxu0 0
    %708 = vmatpush2.bf16.msra.mxu0 0
    %709 = vmatprep.mubr.bf16.mxu0 0
    %710 = vmatmul.mubr.bf16.gmra.mxu0 %v635
    %v711 = vpop.f32.mrf.mxu0
    %v712 = vadd.f32 0.0, %v711
    %v713 = vpop.f32.mrf.mxu0
    %v714 = vadd.f32 0.0, %v713
    %v715 = vpop.f32.mrf.mxu0
    %v716 = vpop.f32.mrf.mxu0
    %717 = vdwg.mxu0
    %v718 = vadd.f32 %v631, %v671
    %v719 = vadd.f32 %v632, %v673
    %v720 = vadd.f32 %v633, %v712
    %v721 = vadd.f32 %v634, %v714
    %v722 = vxor.u32 %v718, 2147483648
    %v723 = vmul.f32 %v722, 1.442695
    %v724 = vpow.pop %v723
    %v725 = vadd.f32 %v724, 1.0
    %v726 = vrcp.pop %v725
    %v727 = vmul.f32 1.0, %v726
    %v728 = vxor.u32 %v719, 2147483648
    %v729 = vmul.f32 %v728, 1.442695
    %v730 = vpow.pop %v729
    %v731 = vadd.f32 %v730, 1.0
    %v732 = vrcp.pop %v731
    %v733 = vmul.f32 1.0, %v732
    %v734 = vtanh.pop %v720
    %v735 = vxor.u32 %v721, 2147483648
    %v736 = vmul.f32 %v735, 1.442695
    %v737 = vpow.pop %v736
    %v738 = vadd.f32 %v737, 1.0
    %v739 = vrcp.pop %v738
    %v740 = vmul.f32 1.0, %v739
    %v741 = vmul.f32 %v733, %v629
    %v742 = vmul.f32 %v727, %v734
    %v743 = vadd.f32 %v741, %v742
    %v744 = vtanh.pop %v743
    %v745 = vmul.f32 %v740, %v744
    %s746 = sadd.s32 %s360, 3
    %p747 = scmp.lt.s32.totalorder %s746, 8
    %s748 = scalar_select %p747, 1, 0
    %v749 = vstv %s748
    %vm750 = vcmp.eq.s32.totalorder %v749, 1
    %v751 = vsel %vm750, %v745, %v628
    %752 = vst [vmem:[#allocation2] sm:$0xff] %v751
    %v753 = vsel %vm750, %v743, %v629
    %754 = vst [vmem:[#allocation3] sm:$0xff] %v753
    %s755 = scalar_lea.vmem [#allocation9], 24
    %756 = vst [vmem:[%s755] sm:$0xff] %v745
    %v757 = vld [vmem:[#allocation2] sm:$0xff]
    %v758 = vld [vmem:[#allocation3] sm:$0xff]
    %s759 = scalar_lea.vmem [#allocation4], 128
    %v760 = vld [vmem:[%s759] sm:$0xff]
    %v761 = vld [vmem:[%s759 + $0x8] sm:$0xff]
    %v762 = vld [vmem:[%s759 + $0x10] sm:$0xff]
    %v763 = vld [vmem:[%s759 + $0x18] sm:$0xff]
    %v764 = vpack.c.bf16 %v757, %v757
    %765 = vmatprep.subr.bf16.mxu0 %v215
    %766 = vmatpush1.bf16.msra.mxu0 %v214
    %767 = vmatprep.subr.bf16.mxu0 %v211
    %768 = vmatpush1.bf16.msra.mxu0 %v210
    %769 = vmatprep.subr.bf16.mxu0 %v207
    %770 = vmatpush1.bf16.msra.mxu0 %v206
    %771 = vmatprep.subr.bf16.mxu0 %v203
    %772 = vmatpush1.bf16.msra.mxu0 %v202
    %773 = vmatprep.subr.bf16.mxu0 %v199
    %774 = vmatpush1.bf16.msra.mxu0 %v198
    %775 = vmatprep.subr.bf16.mxu0 %v195
    %776 = vmatpush1.bf16.msra.mxu0 %v194
    %777 = vmatprep.subr.bf16.mxu0 %v191
    %778 = vmatpush1.bf16.msra.mxu0 %v190
    %779 = vmatprep.subr.bf16.mxu0 %v187
    %780 = vmatpush1.bf16.msra.mxu0 %v186
    %781 = vmatprep.subr.bf16.mxu0 0
    %782 = vmatpush2.bf16.msra.mxu0 0
    %783 = vmatprep.subr.bf16.mxu0 0
    %784 = vmatpush2.bf16.msra.mxu0 0
    %785 = vmatprep.subr.bf16.mxu0 0
    %786 = vmatpush2.bf16.msra.mxu0 0
    %787 = vmatprep.subr.bf16.mxu0 0
    %788 = vmatpush2.bf16.msra.mxu0 0
    %789 = vmatprep.subr.bf16.mxu0 0
    %790 = vmatpush2.bf16.msra.mxu0 0
    %791 = vmatprep.subr.bf16.mxu0 0
    %792 = vmatpush2.bf16.msra.mxu0 0
    %793 = vmatprep.subr.bf16.mxu0 0
    %794 = vmatpush2.bf16.msra.mxu0 0
    %795 = vmatprep.subr.bf16.mxu0 0
    %796 = vmatpush2.bf16.msra.mxu0 0
    %797 = vmatprep.mubr.bf16.mxu0 0
    %798 = vmatmul.mubr.bf16.gmra.mxu0 %v764
    %v799 = vpop.f32.mrf.mxu0
    %v800 = vadd.f32 0.0, %v799
    %v801 = vpop.f32.mrf.mxu0
    %v802 = vadd.f32 0.0, %v801
    %v803 = vpop.f32.mrf.mxu0
    %v804 = vpop.f32.mrf.mxu0
    %805 = vdwg.mxu0
    %806 = vmatprep.subr.bf16.mxu0 %v217
    %807 = vmatpush1.bf16.msra.mxu0 %v216
    %808 = vmatprep.subr.bf16.mxu0 %v213
    %809 = vmatpush1.bf16.msra.mxu0 %v212
    %810 = vmatprep.subr.bf16.mxu0 %v209
    %811 = vmatpush1.bf16.msra.mxu0 %v208
    %812 = vmatprep.subr.bf16.mxu0 %v205
    %813 = vmatpush1.bf16.msra.mxu0 %v204
    %814 = vmatprep.subr.bf16.mxu0 %v201
    %815 = vmatpush1.bf16.msra.mxu0 %v200
    %816 = vmatprep.subr.bf16.mxu0 %v197
    %817 = vmatpush1.bf16.msra.mxu0 %v196
    %818 = vmatprep.subr.bf16.mxu0 %v193
    %819 = vmatpush1.bf16.msra.mxu0 %v192
    %820 = vmatprep.subr.bf16.mxu0 %v189
    %821 = vmatpush1.bf16.msra.mxu0 %v188
    %822 = vmatprep.subr.bf16.mxu0 0
    %823 = vmatpush2.bf16.msra.mxu0 0
    %824 = vmatprep.subr.bf16.mxu0 0
    %825 = vmatpush2.bf16.msra.mxu0 0
    %826 = vmatprep.subr.bf16.mxu0 0
    %827 = vmatpush2.bf16.msra.mxu0 0
    %828 = vmatprep.subr.bf16.mxu0 0
    %829 = vmatpush2.bf16.msra.mxu0 0
    %830 = vmatprep.subr.bf16.mxu0 0
    %831 = vmatpush2.bf16.msra.mxu0 0
    %832 = vmatprep.subr.bf16.mxu0 0
    %833 = vmatpush2.bf16.msra.mxu0 0
    %834 = vmatprep.subr.bf16.mxu0 0
    %835 = vmatpush2.bf16.msra.mxu0 0
    %836 = vmatprep.subr.bf16.mxu0 0
    %837 = vmatpush2.bf16.msra.mxu0 0
    %838 = vmatprep.mubr.bf16.mxu0 0
    %839 = vmatmul.mubr.bf16.gmra.mxu0 %v764
    %v840 = vpop.f32.mrf.mxu0
    %v841 = vadd.f32 0.0, %v840
    %v842 = vpop.f32.mrf.mxu0
    %v843 = vadd.f32 0.0, %v842
    %v844 = vpop.f32.mrf.mxu0
    %v845 = vpop.f32.mrf.mxu0
    %846 = vdwg.mxu0
    %v847 = vadd.f32 %v760, %v800
    %v848 = vadd.f32 %v761, %v802
    %v849 = vadd.f32 %v762, %v841
    %v850 = vadd.f32 %v763, %v843
    %v851 = vxor.u32 %v847, 2147483648
    %v852 = vmul.f32 %v851, 1.442695
    %v853 = vpow.pop %v852
    %v854 = vadd.f32 %v853, 1.0
    %v855 = vrcp.pop %v854
    %v856 = vmul.f32 1.0, %v855
    %v857 = vxor.u32 %v848, 2147483648
    %v858 = vmul.f32 %v857, 1.442695
    %v859 = vpow.pop %v858
    %v860 = vadd.f32 %v859, 1.0
    %v861 = vrcp.pop %v860
    %v862 = vmul.f32 1.0, %v861
    %v863 = vtanh.pop %v849
    %v864 = vxor.u32 %v850, 2147483648
    %v865 = vmul.f32 %v864, 1.442695
    %v866 = vpow.pop %v865
    %v867 = vadd.f32 %v866, 1.0
    %v868 = vrcp.pop %v867
    %v869 = vmul.f32 1.0, %v868
    %v870 = vmul.f32 %v862, %v758
    %v871 = vmul.f32 %v856, %v863
    %v872 = vadd.f32 %v870, %v871
    %v873 = vtanh.pop %v872
    %v874 = vmul.f32 %v869, %v873
    %s875 = sadd.s32 %s360, 4
    %p876 = scmp.lt.s32.totalorder %s875, 8
    %s877 = scalar_select %p876, 1, 0
    %v878 = vstv %s877
    %vm879 = vcmp.eq.s32.totalorder %v878, 1
    %v880 = vsel %vm879, %v874, %v757
    %881 = vst [vmem:[#allocation2] sm:$0xff] %v880
    %v882 = vsel %vm879, %v872, %v758
    %883 = vst [vmem:[#allocation3] sm:$0xff] %v882
    %s884 = scalar_lea.vmem [#allocation9], 32
    %885 = vst [vmem:[%s884] sm:$0xff] %v874
    %v886 = vld [vmem:[#allocation2] sm:$0xff]
    %v887 = vld [vmem:[#allocation3] sm:$0xff]
    %s888 = scalar_lea.vmem [#allocation4], 160
    %v889 = vld [vmem:[%s888] sm:$0xff]
    %v890 = vld [vmem:[%s888 + $0x8] sm:$0xff]
    %v891 = vld [vmem:[%s888 + $0x10] sm:$0xff]
    %v892 = vld [vmem:[%s888 + $0x18] sm:$0xff]
    %v893 = vpack.c.bf16 %v886, %v886
    %894 = vmatprep.subr.bf16.mxu0 %v215
    %895 = vmatpush1.bf16.msra.mxu0 %v214
    %896 = vmatprep.subr.bf16.mxu0 %v211
    %897 = vmatpush1.bf16.msra.mxu0 %v210
    %898 = vmatprep.subr.bf16.mxu0 %v207
    %899 = vmatpush1.bf16.msra.mxu0 %v206
    %900 = vmatprep.subr.bf16.mxu0 %v203
    %901 = vmatpush1.bf16.msra.mxu0 %v202
    %902 = vmatprep.subr.bf16.mxu0 %v199
    %903 = vmatpush1.bf16.msra.mxu0 %v198
    %904 = vmatprep.subr.bf16.mxu0 %v195
    %905 = vmatpush1.bf16.msra.mxu0 %v194
    %906 = vmatprep.subr.bf16.mxu0 %v191
    %907 = vmatpush1.bf16.msra.mxu0 %v190
    %908 = vmatprep.subr.bf16.mxu0 %v187
    %909 = vmatpush1.bf16.msra.mxu0 %v186
    %910 = vmatprep.subr.bf16.mxu0 0
    %911 = vmatpush2.bf16.msra.mxu0 0
    %912 = vmatprep.subr.bf16.mxu0 0
    %913 = vmatpush2.bf16.msra.mxu0 0
    %914 = vmatprep.subr.bf16.mxu0 0
    %915 = vmatpush2.bf16.msra.mxu0 0
    %916 = vmatprep.subr.bf16.mxu0 0
    %917 = vmatpush2.bf16.msra.mxu0 0
    %918 = vmatprep.subr.bf16.mxu0 0
    %919 = vmatpush2.bf16.msra.mxu0 0
    %920 = vmatprep.subr.bf16.mxu0 0
    %921 = vmatpush2.bf16.msra.mxu0 0
    %922 = vmatprep.subr.bf16.mxu0 0
    %923 = vmatpush2.bf16.msra.mxu0 0
    %924 = vmatprep.subr.bf16.mxu0 0
    %925 = vmatpush2.bf16.msra.mxu0 0
    %926 = vmatprep.mubr.bf16.mxu0 0
    %927 = vmatmul.mubr.bf16.gmra.mxu0 %v893
    %v928 = vpop.f32.mrf.mxu0
    %v929 = vadd.f32 0.0, %v928
    %v930 = vpop.f32.mrf.mxu0
    %v931 = vadd.f32 0.0, %v930
    %v932 = vpop.f32.mrf.mxu0
    %v933 = vpop.f32.mrf.mxu0
    %934 = vdwg.mxu0
    %935 = vmatprep.subr.bf16.mxu0 %v217
    %936 = vmatpush1.bf16.msra.mxu0 %v216
    %937 = vmatprep.subr.bf16.mxu0 %v213
    %938 = vmatpush1.bf16.msra.mxu0 %v212
    %939 = vmatprep.subr.bf16.mxu0 %v209
    %940 = vmatpush1.bf16.msra.mxu0 %v208
    %941 = vmatprep.subr.bf16.mxu0 %v205
    %942 = vmatpush1.bf16.msra.mxu0 %v204
    %943 = vmatprep.subr.bf16.mxu0 %v201
    %944 = vmatpush1.bf16.msra.mxu0 %v200
    %945 = vmatprep.subr.bf16.mxu0 %v197
    %946 = vmatpush1.bf16.msra.mxu0 %v196
    %947 = vmatprep.subr.bf16.mxu0 %v193
    %948 = vmatpush1.bf16.msra.mxu0 %v192
    %949 = vmatprep.subr.bf16.mxu0 %v189
    %950 = vmatpush1.bf16.msra.mxu0 %v188
    %951 = vmatprep.subr.bf16.mxu0 0
    %952 = vmatpush2.bf16.msra.mxu0 0
    %953 = vmatprep.subr.bf16.mxu0 0
    %954 = vmatpush2.bf16.msra.mxu0 0
    %955 = vmatprep.subr.bf16.mxu0 0
    %956 = vmatpush2.bf16.msra.mxu0 0
    %957 = vmatprep.subr.bf16.mxu0 0
    %958 = vmatpush2.bf16.msra.mxu0 0
    %959 = vmatprep.subr.bf16.mxu0 0
    %960 = vmatpush2.bf16.msra.mxu0 0
    %961 = vmatprep.subr.bf16.mxu0 0
    %962 = vmatpush2.bf16.msra.mxu0 0
    %963 = vmatprep.subr.bf16.mxu0 0
    %964 = vmatpush2.bf16.msra.mxu0 0
    %965 = vmatprep.subr.bf16.mxu0 0
    %966 = vmatpush2.bf16.msra.mxu0 0
    %967 = vmatprep.mubr.bf16.mxu0 0
    %968 = vmatmul.mubr.bf16.gmra.mxu0 %v893
    %v969 = vpop.f32.mrf.mxu0
    %v970 = vadd.f32 0.0, %v969
    %v971 = vpop.f32.mrf.mxu0
    %v972 = vadd.f32 0.0, %v971
    %v973 = vpop.f32.mrf.mxu0
    %v974 = vpop.f32.mrf.mxu0
    %975 = vdwg.mxu0
    %v976 = vadd.f32 %v889, %v929
    %v977 = vadd.f32 %v890, %v931
    %v978 = vadd.f32 %v891, %v970
    %v979 = vadd.f32 %v892, %v972
    %v980 = vxor.u32 %v976, 2147483648
    %v981 = vmul.f32 %v980, 1.442695
    %v982 = vpow.pop %v981
    %v983 = vadd.f32 %v982, 1.0
    %v984 = vrcp.pop %v983
    %v985 = vmul.f32 1.0, %v984
    %v986 = vxor.u32 %v977, 2147483648
    %v987 = vmul.f32 %v986, 1.442695
    %v988 = vpow.pop %v987
    %v989 = vadd.f32 %v988, 1.0
    %v990 = vrcp.pop %v989
    %v991 = vmul.f32 1.0, %v990
    %v992 = vtanh.pop %v978
    %v993 = vxor.u32 %v979, 2147483648
    %v994 = vmul.f32 %v993, 1.442695
    %v995 = vpow.pop %v994
    %v996 = vadd.f32 %v995, 1.0
    %v997 = vrcp.pop %v996
    %v998 = vmul.f32 1.0, %v997
    %v999 = vmul.f32 %v991, %v887
    %v1000 = vmul.f32 %v985, %v992
    %v1001 = vadd.f32 %v999, %v1000
    %v1002 = vtanh.pop %v1001
    %v1003 = vmul.f32 %v998, %v1002
    %s1004 = sadd.s32 %s360, 5
    %p1005 = scmp.lt.s32.totalorder %s1004, 8
    %s1006 = scalar_select %p1005, 1, 0
    %v1007 = vstv %s1006
    %vm1008 = vcmp.eq.s32.totalorder %v1007, 1
    %v1009 = vsel %vm1008, %v1003, %v886
    %1010 = vst [vmem:[#allocation2] sm:$0xff] %v1009
    %v1011 = vsel %vm1008, %v1001, %v887
    %1012 = vst [vmem:[#allocation3] sm:$0xff] %v1011
    %s1013 = scalar_lea.vmem [#allocation9], 40
    %1014 = vst [vmem:[%s1013] sm:$0xff] %v1003
    %v1015 = vld [vmem:[#allocation2] sm:$0xff]
    %v1016 = vld [vmem:[#allocation3] sm:$0xff]
    %s1017 = scalar_lea.vmem [#allocation4], 192
    %v1018 = vld [vmem:[%s1017] sm:$0xff]
    %v1019 = vld [vmem:[%s1017 + $0x8] sm:$0xff]
    %v1020 = vld [vmem:[%s1017 + $0x10] sm:$0xff]
    %v1021 = vld [vmem:[%s1017 + $0x18] sm:$0xff]
    %v1022 = vpack.c.bf16 %v1015, %v1015
    %1023 = vmatprep.subr.bf16.mxu0 %v215
    %1024 = vmatpush1.bf16.msra.mxu0 %v214
    %1025 = vmatprep.subr.bf16.mxu0 %v211
    %1026 = vmatpush1.bf16.msra.mxu0 %v210
    %1027 = vmatprep.subr.bf16.mxu0 %v207
    %1028 = vmatpush1.bf16.msra.mxu0 %v206
    %1029 = vmatprep.subr.bf16.mxu0 %v203
    %1030 = vmatpush1.bf16.msra.mxu0 %v202
    %1031 = vmatprep.subr.bf16.mxu0 %v199
    %1032 = vmatpush1.bf16.msra.mxu0 %v198
    %1033 = vmatprep.subr.bf16.mxu0 %v195
    %1034 = vmatpush1.bf16.msra.mxu0 %v194
    %1035 = vmatprep.subr.bf16.mxu0 %v191
    %1036 = vmatpush1.bf16.msra.mxu0 %v190
    %1037 = vmatprep.subr.bf16.mxu0 %v187
    %1038 = vmatpush1.bf16.msra.mxu0 %v186
    %1039 = vmatprep.subr.bf16.mxu0 0
    %1040 = vmatpush2.bf16.msra.mxu0 0
    %1041 = vmatprep.subr.bf16.mxu0 0
    %1042 = vmatpush2.bf16.msra.mxu0 0
    %1043 = vmatprep.subr.bf16.mxu0 0
    %1044 = vmatpush2.bf16.msra.mxu0 0
    %1045 = vmatprep.subr.bf16.mxu0 0
    %1046 = vmatpush2.bf16.msra.mxu0 0
    %1047 = vmatprep.subr.bf16.mxu0 0
    %1048 = vmatpush2.bf16.msra.mxu0 0
    %1049 = vmatprep.subr.bf16.mxu0 0
    %1050 = vmatpush2.bf16.msra.mxu0 0
    %1051 = vmatprep.subr.bf16.mxu0 0
    %1052 = vmatpush2.bf16.msra.mxu0 0
    %1053 = vmatprep.subr.bf16.mxu0 0
    %1054 = vmatpush2.bf16.msra.mxu0 0
    %1055 = vmatprep.mubr.bf16.mxu0 0
    %1056 = vmatmul.mubr.bf16.gmra.mxu0 %v1022
    %v1057 = vpop.f32.mrf.mxu0
    %v1058 = vadd.f32 0.0, %v1057
    %v1059 = vpop.f32.mrf.mxu0
    %v1060 = vadd.f32 0.0, %v1059
    %v1061 = vpop.f32.mrf.mxu0
    %v1062 = vpop.f32.mrf.mxu0
    %1063 = vdwg.mxu0
    %1064 = vmatprep.subr.bf16.mxu0 %v217
    %1065 = vmatpush1.bf16.msra.mxu0 %v216
    %1066 = vmatprep.subr.bf16.mxu0 %v213
    %1067 = vmatpush1.bf16.msra.mxu0 %v212
    %1068 = vmatprep.subr.bf16.mxu0 %v209
    %1069 = vmatpush1.bf16.msra.mxu0 %v208
    %1070 = vmatprep.subr.bf16.mxu0 %v205
    %1071 = vmatpush1.bf16.msra.mxu0 %v204
    %1072 = vmatprep.subr.bf16.mxu0 %v201
    %1073 = vmatpush1.bf16.msra.mxu0 %v200
    %1074 = vmatprep.subr.bf16.mxu0 %v197
    %1075 = vmatpush1.bf16.msra.mxu0 %v196
    %1076 = vmatprep.subr.bf16.mxu0 %v193
    %1077 = vmatpush1.bf16.msra.mxu0 %v192
    %1078 = vmatprep.subr.bf16.mxu0 %v189
    %1079 = vmatpush1.bf16.msra.mxu0 %v188
    %1080 = vmatprep.subr.bf16.mxu0 0
    %1081 = vmatpush2.bf16.msra.mxu0 0
    %1082 = vmatprep.subr.bf16.mxu0 0
    %1083 = vmatpush2.bf16.msra.mxu0 0
    %1084 = vmatprep.subr.bf16.mxu0 0
    %1085 = vmatpush2.bf16.msra.mxu0 0
    %1086 = vmatprep.subr.bf16.mxu0 0
    %1087 = vmatpush2.bf16.msra.mxu0 0
    %1088 = vmatprep.subr.bf16.mxu0 0
    %1089 = vmatpush2.bf16.msra.mxu0 0
    %1090 = vmatprep.subr.bf16.mxu0 0
    %1091 = vmatpush2.bf16.msra.mxu0 0
    %1092 = vmatprep.subr.bf16.mxu0 0
    %1093 = vmatpush2.bf16.msra.mxu0 0
    %1094 = vmatprep.subr.bf16.mxu0 0
    %1095 = vmatpush2.bf16.msra.mxu0 0
    %1096 = vmatprep.mubr.bf16.mxu0 0
    %1097 = vmatmul.mubr.bf16.gmra.mxu0 %v1022
    %v1098 = vpop.f32.mrf.mxu0
    %v1099 = vadd.f32 0.0, %v1098
    %v1100 = vpop.f32.mrf.mxu0
    %v1101 = vadd.f32 0.0, %v1100
    %v1102 = vpop.f32.mrf.mxu0
    %v1103 = vpop.f32.mrf.mxu0
    %1104 = vdwg.mxu0
    %v1105 = vadd.f32 %v1018, %v1058
    %v1106 = vadd.f32 %v1019, %v1060
    %v1107 = vadd.f32 %v1020, %v1099
    %v1108 = vadd.f32 %v1021, %v1101
    %v1109 = vxor.u32 %v1105, 2147483648
    %v1110 = vmul.f32 %v1109, 1.442695
    %v1111 = vpow.pop %v1110
    %v1112 = vadd.f32 %v1111, 1.0
    %v1113 = vrcp.pop %v1112
    %v1114 = vmul.f32 1.0, %v1113
    %v1115 = vxor.u32 %v1106, 2147483648
    %v1116 = vmul.f32 %v1115, 1.442695
    %v1117 = vpow.pop %v1116
    %v1118 = vadd.f32 %v1117, 1.0
    %v1119 = vrcp.pop %v1118
    %v1120 = vmul.f32 1.0, %v1119
    %v1121 = vtanh.pop %v1107
    %v1122 = vxor.u32 %v1108, 2147483648
    %v1123 = vmul.f32 %v1122, 1.442695
    %v1124 = vpow.pop %v1123
    %v1125 = vadd.f32 %v1124, 1.0
    %v1126 = vrcp.pop %v1125
    %v1127 = vmul.f32 1.0, %v1126
    %v1128 = vmul.f32 %v1120, %v1016
    %v1129 = vmul.f32 %v1114, %v1121
    %v1130 = vadd.f32 %v1128, %v1129
    %v1131 = vtanh.pop %v1130
    %v1132 = vmul.f32 %v1127, %v1131
    %s1133 = sadd.s32 %s360, 6
    %p1134 = scmp.lt.s32.totalorder %s1133, 8
    %s1135 = scalar_select %p1134, 1, 0
    %v1136 = vstv %s1135
    %vm1137 = vcmp.eq.s32.totalorder %v1136, 1
    %v1138 = vsel %vm1137, %v1132, %v1015
    %1139 = vst [vmem:[#allocation2] sm:$0xff] %v1138
    %v1140 = vsel %vm1137, %v1130, %v1016
    %1141 = vst [vmem:[#allocation3] sm:$0xff] %v1140
    %s1142 = scalar_lea.vmem [#allocation9], 48
    %1143 = vst [vmem:[%s1142] sm:$0xff] %v1132
    %v1144 = vld [vmem:[#allocation2] sm:$0xff]
    %v1145 = vld [vmem:[#allocation3] sm:$0xff]
    %s1146 = scalar_lea.vmem [#allocation4], 224
    %v1147 = vld [vmem:[%s1146] sm:$0xff]
    %v1148 = vld [vmem:[%s1146 + $0x8] sm:$0xff]
    %v1149 = vld [vmem:[%s1146 + $0x10] sm:$0xff]
    %v1150 = vld [vmem:[%s1146 + $0x18] sm:$0xff]
    %v1151 = vpack.c.bf16 %v1144, %v1144
    %1152 = vmatprep.subr.bf16.mxu0 %v215
    %1153 = vmatpush1.bf16.msra.mxu0 %v214
    %1154 = vmatprep.subr.bf16.mxu0 %v211
    %1155 = vmatpush1.bf16.msra.mxu0 %v210
    %1156 = vmatprep.subr.bf16.mxu0 %v207
    %1157 = vmatpush1.bf16.msra.mxu0 %v206
    %1158 = vmatprep.subr.bf16.mxu0 %v203
    %1159 = vmatpush1.bf16.msra.mxu0 %v202
    %1160 = vmatprep.subr.bf16.mxu0 %v199
    %1161 = vmatpush1.bf16.msra.mxu0 %v198
    %1162 = vmatprep.subr.bf16.mxu0 %v195
    %1163 = vmatpush1.bf16.msra.mxu0 %v194
    %1164 = vmatprep.subr.bf16.mxu0 %v191
    %1165 = vmatpush1.bf16.msra.mxu0 %v190
    %1166 = vmatprep.subr.bf16.mxu0 %v187
    %1167 = vmatpush1.bf16.msra.mxu0 %v186
    %1168 = vmatprep.subr.bf16.mxu0 0
    %1169 = vmatpush2.bf16.msra.mxu0 0
    %1170 = vmatprep.subr.bf16.mxu0 0
    %1171 = vmatpush2.bf16.msra.mxu0 0
    %1172 = vmatprep.subr.bf16.mxu0 0
    %1173 = vmatpush2.bf16.msra.mxu0 0
    %1174 = vmatprep.subr.bf16.mxu0 0
    %1175 = vmatpush2.bf16.msra.mxu0 0
    %1176 = vmatprep.subr.bf16.mxu0 0
    %1177 = vmatpush2.bf16.msra.mxu0 0
    %1178 = vmatprep.subr.bf16.mxu0 0
    %1179 = vmatpush2.bf16.msra.mxu0 0
    %1180 = vmatprep.subr.bf16.mxu0 0
    %1181 = vmatpush2.bf16.msra.mxu0 0
    %1182 = vmatprep.subr.bf16.mxu0 0
    %1183 = vmatpush2.bf16.msra.mxu0 0
    %1184 = vmatprep.mubr.bf16.mxu0 0
    %1185 = vmatmul.mubr.bf16.gmra.mxu0 %v1151
    %v1186 = vpop.f32.mrf.mxu0
    %v1187 = vadd.f32 0.0, %v1186
    %v1188 = vpop.f32.mrf.mxu0
    %v1189 = vadd.f32 0.0, %v1188
    %v1190 = vpop.f32.mrf.mxu0
    %v1191 = vpop.f32.mrf.mxu0
    %1192 = vdwg.mxu0
    %1193 = vmatprep.subr.bf16.mxu0 %v217
    %1194 = vmatpush1.bf16.msra.mxu0 %v216
    %1195 = vmatprep.subr.bf16.mxu0 %v213
    %1196 = vmatpush1.bf16.msra.mxu0 %v212
    %1197 = vmatprep.subr.bf16.mxu0 %v209
    %1198 = vmatpush1.bf16.msra.mxu0 %v208
    %1199 = vmatprep.subr.bf16.mxu0 %v205
    %1200 = vmatpush1.bf16.msra.mxu0 %v204
    %1201 = vmatprep.subr.bf16.mxu0 %v201
    %1202 = vmatpush1.bf16.msra.mxu0 %v200
    %1203 = vmatprep.subr.bf16.mxu0 %v197
    %1204 = vmatpush1.bf16.msra.mxu0 %v196
    %1205 = vmatprep.subr.bf16.mxu0 %v193
    %1206 = vmatpush1.bf16.msra.mxu0 %v192
    %1207 = vmatprep.subr.bf16.mxu0 %v189
    %1208 = vmatpush1.bf16.msra.mxu0 %v188
    %1209 = vmatprep.subr.bf16.mxu0 0
    %1210 = vmatpush2.bf16.msra.mxu0 0
    %1211 = vmatprep.subr.bf16.mxu0 0
    %1212 = vmatpush2.bf16.msra.mxu0 0
    %1213 = vmatprep.subr.bf16.mxu0 0
    %1214 = vmatpush2.bf16.msra.mxu0 0
    %1215 = vmatprep.subr.bf16.mxu0 0
    %1216 = vmatpush2.bf16.msra.mxu0 0
    %1217 = vmatprep.subr.bf16.mxu0 0
    %1218 = vmatpush2.bf16.msra.mxu0 0
    %1219 = vmatprep.subr.bf16.mxu0 0
    %1220 = vmatpush2.bf16.msra.mxu0 0
    %1221 = vmatprep.subr.bf16.mxu0 0
    %1222 = vmatpush2.bf16.msra.mxu0 0
    %1223 = vmatprep.subr.bf16.mxu0 0
    %1224 = vmatpush2.bf16.msra.mxu0 0
    %1225 = vmatprep.mubr.bf16.mxu0 0
    %1226 = vmatmul.mubr.bf16.gmra.mxu0 %v1151
    %v1227 = vpop.f32.mrf.mxu0
    %v1228 = vadd.f32 0.0, %v1227
    %v1229 = vpop.f32.mrf.mxu0
    %v1230 = vadd.f32 0.0, %v1229
    %v1231 = vpop.f32.mrf.mxu0
    %v1232 = vpop.f32.mrf.mxu0
    %1233 = vdwg.mxu0
    %v1234 = vadd.f32 %v1147, %v1187
    %v1235 = vadd.f32 %v1148, %v1189
    %v1236 = vadd.f32 %v1149, %v1228
    %v1237 = vadd.f32 %v1150, %v1230
    %v1238 = vxor.u32 %v1234, 2147483648
    %v1239 = vmul.f32 %v1238, 1.442695
    %v1240 = vpow.pop %v1239
    %v1241 = vadd.f32 %v1240, 1.0
    %v1242 = vrcp.pop %v1241
    %v1243 = vmul.f32 1.0, %v1242
    %v1244 = vxor.u32 %v1235, 2147483648
    %v1245 = vmul.f32 %v1244, 1.442695
    %v1246 = vpow.pop %v1245
    %v1247 = vadd.f32 %v1246, 1.0
    %v1248 = vrcp.pop %v1247
    %v1249 = vmul.f32 1.0, %v1248
    %v1250 = vtanh.pop %v1236
    %v1251 = vxor.u32 %v1237, 2147483648
    %v1252 = vmul.f32 %v1251, 1.442695
    %v1253 = vpow.pop %v1252
    %v1254 = vadd.f32 %v1253, 1.0
    %v1255 = vrcp.pop %v1254
    %v1256 = vmul.f32 1.0, %v1255
    %v1257 = vmul.f32 %v1249, %v1145
    %v1258 = vmul.f32 %v1243, %v1250
    %v1259 = vadd.f32 %v1257, %v1258
    %v1260 = vtanh.pop %v1259
    %v1261 = vmul.f32 %v1256, %v1260
    %s1262 = sadd.s32 %s360, 7
    %p1263 = scmp.lt.s32.totalorder %s1262, 8
    %s1264 = scalar_select %p1263, 1, 0
    %v1265 = vstv %s1264
    %vm1266 = vcmp.eq.s32.totalorder %v1265, 1
    %v1267 = vsel %vm1266, %v1261, %v1144
    %1268 = vst [vmem:[#allocation2] sm:$0xff] %v1267
    %v1269 = vsel %vm1266, %v1259, %v1145
    %1270 = vst [vmem:[#allocation3] sm:$0xff] %v1269
    %s1271 = scalar_lea.vmem [#allocation9], 56
    %1272 = vst [vmem:[%s1271] sm:$0xff] %v1261
    // Predicated region
    $region22: #{tpu_custom_call.1} parent=1 // pred_check
      %p1273 = pneg %p45
    $region23: #{tpu_custom_call.1} parent=1 // pred_check_branch
      %1275 = sbr.rel (%p1273) target = $region25
    $region24: #{tpu_custom_call.1} parent=1 // pred_region
      %v1276 = vld [vmem:[#allocation2] sm:$0xff]
      %1277 = vst [vmem:[#allocation10] sm:$0xff] %v1276
      %v1278 = vld [vmem:[#allocation3] sm:$0xff]
      %1279 = vst [vmem:[#allocation12] sm:$0xff] %v1278
    $region25: #{tpu_custom_call.1} parent=1 // pred_fallthru
      _
    // Predicated region
    $region26: #{tpu_custom_call.1} parent=1 // pred_check
      _
    $region27: #{tpu_custom_call.1} parent=1 // pred_check_branch
      %1281 = sbr.rel (0) target = $region29
    $region28: #{tpu_custom_call.1} parent=1 // pred_region
      %s1283 = ssub.s32 1024, 1024
      %1284 = vsyncadd [#allocation6], %s1283
      %s1285 = sshll.u32 [#allocation9], 4
      %s1286 = int_to_ptr.vmem [resolvable:$true] %s1285
      %1291 = dma.vmem_to_hbm [thread:$0]  %s1286, 1024, %s2, [#allocation6], 128, 128, 8
    $region29: #{tpu_custom_call.1} parent=1 // pred_fallthru
      _
    // Predicated region
    $region30: #{tpu_custom_call.1} parent=1 // pred_check
      _
    $region31: #{tpu_custom_call.1} parent=1 // pred_check_branch
      %1293 = sbr.rel (0) target = $region33
    $region32: #{tpu_custom_call.1} parent=1 // pred_region
      %s1295 = ssub.s32 128, 128
      %1296 = vsyncadd [#allocation11], %s1295
      %s1298 = sshll.u32 [#allocation10], 4
      %s1299 = int_to_ptr.vmem [resolvable:$true] %s1298
      %1301 = dma.vmem_to_hbm [thread:$0]  %s1299, 128, %s3, [#allocation11]
    $region33: #{tpu_custom_call.1} parent=1 // pred_fallthru
      _
    // Predicated region
    $region34: #{tpu_custom_call.1} parent=1 // pred_check
      _
    $region35: #{tpu_custom_call.1} parent=1 // pred_check_branch
      %1303 = sbr.rel (0) target = $region37
    $region36: #{tpu_custom_call.1} parent=1 // pred_region
      %s1305 = ssub.s32 128, 128
      %1306 = vsyncadd [#allocation11], %s1305
      %s1308 = sshll.u32 [#allocation12], 4
      %s1309 = int_to_ptr.vmem [resolvable:$true] %s1308
      %1311 = dma.vmem_to_hbm [thread:$0]  %s1309, 128, %s4, [#allocation11]
    $region37: #{tpu_custom_call.1} parent=1 // pred_fallthru
      _
    // Predicated region
    $region38: #{tpu_custom_call.1} parent=1 // pred_check
      _
    $region39: #{tpu_custom_call.1} parent=1 // pred_check_branch
      %1313 = sbr.rel (0) target = $region41
    $region40: #{tpu_custom_call.1} parent=1 // pred_region
      %1314 = dma.done [#allocation6], 1024
    $region41: #{tpu_custom_call.1} parent=1 // pred_fallthru
      _
    // Predicated region
    $region42: #{tpu_custom_call.1} parent=1 // pred_check
      _
    $region43: #{tpu_custom_call.1} parent=1 // pred_check_branch
      %1316 = sbr.rel (0) target = $region45
    $region44: #{tpu_custom_call.1} parent=1 // pred_region
      %1317 = dma.done [#allocation11], 128
    $region45: #{tpu_custom_call.1} parent=1 // pred_fallthru
      _
    // Predicated region
    $region46: #{tpu_custom_call.1} parent=1 // pred_check
      _
    $region47: #{tpu_custom_call.1} parent=1 // pred_check_branch
      %1319 = sbr.rel (0) target = $region49
    $region48: #{tpu_custom_call.1} parent=1 // pred_region
      %1320 = dma.done [#allocation11], 128
    $region49: #{tpu_custom_call.1} parent=1 // pred_fallthru
      _
    %1321 = vsyncpa [#allocation5], 1
    %1322 = vsyncpa [#allocation8], 1
    %1323 = vsyncpa [#allocation6], 1
    %1324 = vsyncpa [#allocation11], 1

</llo_original>
